<compile_context>
chip_gen: v7x
topology: tpu7x:2x2x1
jax: 0.10.0
libtpu: 0.0.40
codegen_flags: <defaults>
</compile_context>

<pallas_src>
import jax
import jax.numpy as jnp
from jax.experimental import pallas as pl
from jax.experimental.pallas import tpu as pltpu

NUM_KNOTS = 10
LANE = 128


def _round_up(n, m):
    return ((n + m - 1) // m) * m


def _make_kan_kernel(hidden_dim):
    H = hidden_dim

    def kernel(knots_ref, coefs_ref, x_ref,
               w1_ref, b1_ref, w2_ref, b2_ref, w3_ref, b3_ref,
               out_ref):
        def spline(h, row):
            # h: (F, TB) f32.  knots/coefs live in SMEM; each knot is
            # sub/abs/mul/add with *scalar* operands -> no (F, TB)
            # lane-broadcasts contending for the XLU ports.
            hc = jnp.clip(h, -1.0, 1.0)
            acc = jnp.zeros_like(hc)
            for i in range(NUM_KNOTS):              # static unroll over knots
                acc = acc + coefs_ref[row, i] * jnp.abs(hc - knots_ref[row, i])
            return acc

        x = x_ref[...]                              # (TB, D_in) block, as stored in HBM

        # layer 1: fused phi1|psi1, (2H, D_in) @ (D_in, TB) -> (2H, TB)
        h1 = jnp.dot(w1_ref[...], x.T, preferred_element_type=jnp.float32) + b1_ref[...]
        s1 = spline(h1[:H, :], 0) + spline(h1[H:, :], 1)      # (H, TB), tile-aligned split

        # layer 2: fused phi2|psi2, (2H, H) @ (H, TB) -> (2H, TB)
        h2 = jnp.dot(w2_ref[...], s1, preferred_element_type=jnp.float32) + b2_ref[...]
        s2 = spline(h2[:H, :], 2) + spline(h2[H:, :], 3)      # (H, TB)

        # layer 3 (head): fused phi3|psi3, (2, H) @ (H, TB) -> (2, TB)
        h3 = jnp.dot(w3_ref[...], s2, preferred_element_type=jnp.float32) + b3_ref[...]
        out = spline(h3[0:1, :], 4) + spline(h3[1:2, :], 5)   # (1, TB), lane-dense

        out_ref[...] = jax.nn.sigmoid(out)          # sigmoid -> EUP slot

    return kernel


def kan_forward(x, params, *, block_b=2048):
    """x: (B, input_dim) f32.  params: PyTorch-layout weights (out, in), biases
    (out,), knots/coefs (6, NUM_KNOTS).  Returns (B, 1) sigmoid output."""
    B, D_in = x.shape
    H = params["w_phi1"].shape[0]
    if H % 8:
        raise ValueError("hidden_dim must be a multiple of 8 so the phi/psi "
                         "sublane split stays tile-aligned (pad H otherwise)")

    # ---- pack fused, feature-major parameters (constant-folded under jit) ----
    f32 = jnp.float32
    w1 = jnp.concatenate([params["w_phi1"], params["w_psi1"]], axis=0).astype(f32)           # (2H, D_in)
    b1 = jnp.concatenate([params["b_phi1"], params["b_psi1"]], axis=0)[:, None].astype(f32)  # (2H, 1)
    w2 = jnp.concatenate([params["w_phi2"], params["w_psi2"]], axis=0).astype(f32)           # (2H, H)
    b2 = jnp.concatenate([params["b_phi2"], params["b_psi2"]], axis=0)[:, None].astype(f32)  # (2H, 1)
    w3 = jnp.concatenate([params["w_phi3"], params["w_psi3"]], axis=0).astype(f32)           # (2, H)
    b3 = jnp.concatenate([params["b_phi3"], params["b_psi3"]], axis=0)[:, None].astype(f32)  # (2, 1)
    knots = params["knots"].astype(f32)              # (6, K) -> SMEM scalar table
    coefs = params["coefs"].astype(f32)              # (6, K) -> SMEM scalar table

    # ---- batch tiling: batch on the lane axis of the output, tile multiple of 128 ----
    b_ceil = _round_up(B, LANE)
    tb = min(_round_up(block_b, LANE), b_ceil)
    # keep >=2 grid steps when the batch allows it (v7x megacore uses both TCs)
    if b_ceil >= 2 * LANE and pl.cdiv(B, tb) < 2:
        tb = _round_up(pl.cdiv(b_ceil, 2), LANE)
    grid = pl.cdiv(B, tb)
    b_pad = grid * tb

    x = x.astype(f32)
    if b_pad != B:
        # row-pad only (no transpose); a no-op whenever B is a tile multiple
        x = jnp.pad(x, ((0, b_pad - B), (0, 0)))

    def resident(a):
        # constant index_map -> stays VMEM-resident across the batch grid
        return pl.BlockSpec(a.shape, lambda i: (0, 0))

    smem_spec = pl.BlockSpec(memory_space=pltpu.MemorySpace.SMEM)

    in_specs = [
        smem_spec,                                   # knots (6, K)
        smem_spec,                                   # coefs (6, K)
        pl.BlockSpec((tb, D_in), lambda i: (i, 0)),  # x tile (TB, D_in)
        resident(w1), resident(b1),
        resident(w2), resident(b2),
        resident(w3), resident(b3),
    ]

    matmul_flops = 2 * b_pad * (2 * H * D_in + 2 * H * H + 2 * H)
    spline_flops = 4 * NUM_KNOTS * (4 * H + 2) * b_pad
    param_bytes = 4 * (w1.size + b1.size + w2.size + b2.size + w3.size + b3.size
                       + knots.size + coefs.size)
    cost = pl.CostEstimate(
        flops=int(matmul_flops + spline_flops),
        transcendentals=int(b_pad),
        bytes_accessed=int(4 * (b_pad * D_in + b_pad) + param_bytes))

    out = pl.pallas_call(
        _make_kan_kernel(H),
        out_shape=jax.ShapeDtypeStruct((1, b_pad), jnp.float32),
        grid=(grid,),
        in_specs=in_specs,
        out_specs=pl.BlockSpec((1, tb), lambda i: (0, i)),
        compiler_params=pltpu.CompilerParams(
            dimension_semantics=("parallel",),
            vmem_limit_bytes=32 * 1024 * 1024),
        cost_estimate=cost,
    )(knots, coefs, x, w1, b1, w2, b2, w3, b3)

    return out[0, :B].reshape(B, 1)


# ------------------------- parameter construction -------------------------

def make_params(key, input_dim, hidden_dim):
    ks = jax.random.split(key, 7)

    def kaiming(k, fan_out, fan_in):
        # torch kaiming_normal_ default: std = sqrt(2 / fan_in); weight is (out, in)
        return (jax.random.normal(k, (fan_out, fan_in), jnp.float32)
                * jnp.sqrt(2.0 / fan_in))

    return {
        "w_phi1": kaiming(ks[0], hidden_dim, input_dim),
        "b_phi1": jnp.zeros((hidden_dim,), jnp.float32),
        "w_psi1": kaiming(ks[1], hidden_dim, input_dim),
        "b_psi1": jnp.zeros((hidden_dim,), jnp.float32),
        "w_phi2": kaiming(ks[2], hidden_dim, hidden_dim),
        "b_phi2": jnp.zeros((hidden_dim,), jnp.float32),
        "w_psi2": kaiming(ks[3], hidden_dim, hidden_dim),
        "b_psi2": jnp.zeros((hidden_dim,), jnp.float32),
        "w_phi3": kaiming(ks[4], 1, hidden_dim),
        "b_phi3": jnp.zeros((1,), jnp.float32),
        "w_psi3": kaiming(ks[5], 1, hidden_dim),
        "b_psi3": jnp.zeros((1,), jnp.float32),
        # SplineActivation: knots = linspace(-1, 1, K); the module inits the
        # coefficients to zero (constant 0.5 output) -> use small non-zero
        # coefs so the test actually exercises the spline math.
        "knots": jnp.tile(jnp.linspace(-1.0, 1.0, NUM_KNOTS,
                                       dtype=jnp.float32)[None, :], (6, 1)),
        "coefs": 0.1 * jax.random.normal(ks[6], (6, NUM_KNOTS), jnp.float32),
    }


# ------------------------- pure-JAX reference -------------------------

def kan_reference(x, p):
    def spline(v, idx):
        vc = jnp.clip(v, -1.0, 1.0)
        acc = jnp.zeros_like(vc)
        for i in range(NUM_KNOTS):
            acc = acc + p["coefs"][idx, i] * jnp.abs(vc - p["knots"][idx, i])
        return acc

    def lin(v, w, b):
        return jnp.dot(v, w.T, precision=jax.lax.Precision.HIGHEST) + b

    s1 = spline(lin(x, p["w_phi1"], p["b_phi1"]), 0) + spline(lin(x, p["w_psi1"], p["b_psi1"]), 1)
    s2 = spline(lin(s1, p["w_phi2"], p["b_phi2"]), 2) + spline(lin(s1, p["w_psi2"], p["b_psi2"]), 3)
    out = spline(lin(s2, p["w_phi3"], p["b_phi3"]), 4) + spline(lin(s2, p["w_psi3"], p["b_psi3"]), 5)
    return jax.nn.sigmoid(out)


if __name__ == "__main__":
    B, INPUT_DIM, HIDDEN_DIM = 8, 16, 32

    key = jax.random.PRNGKey(0)
    kx, kp = jax.random.split(key)
    x = jax.random.normal(kx, (B, INPUT_DIM), jnp.float32)
    params = make_params(kp, INPUT_DIM, HIDDEN_DIM)

    out = kan_forward(x, params)
    out = jax.block_until_ready(out)

    ref = kan_reference(x, params)
    assert out.shape == (B, 1)
    assert jnp.allclose(out, ref, atol=2e-5, rtol=2e-5), (out, ref)

    print("KERNEL_OK")
</pallas_src>

<mosaic_0001>
module attributes {stable_mosaic.version = 11 : i64} {
  func.func @kernel(%arg0: i32, %arg1: memref<6x10xf32, #tpu.memory_space<smem>>, %arg2: memref<6x10xf32, #tpu.memory_space<smem>>, %arg3: memref<128x16xf32, #tpu.memory_space<vmem>>, %arg4: memref<64x16xf32, #tpu.memory_space<vmem>>, %arg5: memref<64x1xf32, #tpu.memory_space<vmem>>, %arg6: memref<64x32xf32, #tpu.memory_space<vmem>>, %arg7: memref<64x1xf32, #tpu.memory_space<vmem>>, %arg8: memref<2x32xf32, #tpu.memory_space<vmem>>, %arg9: memref<2x1xf32, #tpu.memory_space<vmem>>, %arg10: memref<1x128xf32, #tpu.memory_space<vmem>>) attributes {dimension_semantics = [#tpu.dimension_semantics<parallel>], iteration_bounds = array<i64: 1>, scalar_prefetch = 0 : i64, scratch_operands = 0 : i64, tpu.core_type = #tpu.core_type<tc>, window_params = [{transform_indices = @transform_0, window_bounds = array<i64: 6, 10>}, {transform_indices = @transform_1, window_bounds = array<i64: 6, 10>}, {transform_indices = @transform_2, window_bounds = array<i64: 128, 16>}, {pipeline_mode = #tpu.pipeline_mode<synchronous>, transform_indices = @transform_3, window_bounds = array<i64: 64, 16>}, {pipeline_mode = #tpu.pipeline_mode<synchronous>, transform_indices = @transform_4, window_bounds = array<i64: 64, 1>}, {pipeline_mode = #tpu.pipeline_mode<synchronous>, transform_indices = @transform_5, window_bounds = array<i64: 64, 32>}, {pipeline_mode = #tpu.pipeline_mode<synchronous>, transform_indices = @transform_6, window_bounds = array<i64: 64, 1>}, {pipeline_mode = #tpu.pipeline_mode<synchronous>, transform_indices = @transform_7, window_bounds = array<i64: 2, 32>}, {pipeline_mode = #tpu.pipeline_mode<synchronous>, transform_indices = @transform_8, window_bounds = array<i64: 2, 1>}, {transform_indices = @transform_9, window_bounds = array<i64: 1, 128>}]} {
    %c0 = arith.constant 0 : index
    %c0_0 = arith.constant 0 : index
    %0 = vector.load %arg3[%c0, %c0_0] : memref<128x16xf32, #tpu.memory_space<vmem>>, vector<128x16xf32>
    %c0_1 = arith.constant 0 : index
    %c0_2 = arith.constant 0 : index
    %1 = vector.load %arg4[%c0_1, %c0_2] : memref<64x16xf32, #tpu.memory_space<vmem>>, vector<64x16xf32>
    %2 = tpu.transpose %0, [1, 0] : vector<128x16xf32> -> vector<16x128xf32>
    %cst = arith.constant dense<0.000000e+00> : vector<64x128xf32>
    %3 = tpu.matmul %1, %2, %cst {dimension_numbers = #tpu.dot_dimension_numbers<[1], [0], [0], [1], [0, 0, 1, 1], [], []>} : vector<64x16xf32>, vector<16x128xf32>, vector<64x128xf32> -> vector<64x128xf32>
    %c0_3 = arith.constant 0 : index
    %c0_4 = arith.constant 0 : index
    %4 = vector.load %arg5[%c0_3, %c0_4] : memref<64x1xf32, #tpu.memory_space<vmem>>, vector<64x1xf32>
    %5 = vector.broadcast %4 : vector<64x1xf32> to vector<64x128xf32>
    %6 = arith.addf %3, %5 : vector<64x128xf32>
    %7 = vector.extract_strided_slice %6 {offsets = [0, 0], sizes = [32, 128], strides = [1, 1]} : vector<64x128xf32> to vector<32x128xf32>
    %cst_5 = arith.constant -1.000000e+00 : f32
    %cst_6 = arith.constant 1.000000e+00 : f32
    %8 = vector.broadcast %cst_5 : f32 to vector<32x128xf32>
    %9 = arith.maximumf %8, %7 : vector<32x128xf32>
    %10 = vector.broadcast %cst_6 : f32 to vector<32x128xf32>
    %11 = arith.minimumf %10, %9 : vector<32x128xf32>
    %cst_7 = arith.constant 0.000000e+00 : f32
    %12 = vector.broadcast %cst_7 : f32 to vector<32x128xf32>
    %c0_8 = arith.constant 0 : index
    %c0_9 = arith.constant 0 : index
    %13 = memref.load %arg2[%c0_8, %c0_9] : memref<6x10xf32, #tpu.memory_space<smem>>
    %c0_10 = arith.constant 0 : index
    %c0_11 = arith.constant 0 : index
    %14 = memref.load %arg1[%c0_10, %c0_11] : memref<6x10xf32, #tpu.memory_space<smem>>
    %15 = vector.broadcast %14 : f32 to vector<32x128xf32>
    %16 = arith.subf %11, %15 : vector<32x128xf32>
    %17 = math.absf %16 : vector<32x128xf32>
    %18 = vector.broadcast %13 : f32 to vector<32x128xf32>
    %19 = arith.mulf %18, %17 : vector<32x128xf32>
    %20 = arith.addf %12, %19 : vector<32x128xf32>
    %c0_12 = arith.constant 0 : index
    %c1 = arith.constant 1 : index
    %21 = memref.load %arg2[%c0_12, %c1] : memref<6x10xf32, #tpu.memory_space<smem>>
    %c0_13 = arith.constant 0 : index
    %c1_14 = arith.constant 1 : index
    %22 = memref.load %arg1[%c0_13, %c1_14] : memref<6x10xf32, #tpu.memory_space<smem>>
    %23 = vector.broadcast %22 : f32 to vector<32x128xf32>
    %24 = arith.subf %11, %23 : vector<32x128xf32>
    %25 = math.absf %24 : vector<32x128xf32>
    %26 = vector.broadcast %21 : f32 to vector<32x128xf32>
    %27 = arith.mulf %26, %25 : vector<32x128xf32>
    %28 = arith.addf %20, %27 : vector<32x128xf32>
    %c0_15 = arith.constant 0 : index
    %c2 = arith.constant 2 : index
    %29 = memref.load %arg2[%c0_15, %c2] : memref<6x10xf32, #tpu.memory_space<smem>>
    %c0_16 = arith.constant 0 : index
    %c2_17 = arith.constant 2 : index
    %30 = memref.load %arg1[%c0_16, %c2_17] : memref<6x10xf32, #tpu.memory_space<smem>>
    %31 = vector.broadcast %30 : f32 to vector<32x128xf32>
    %32 = arith.subf %11, %31 : vector<32x128xf32>
    %33 = math.absf %32 : vector<32x128xf32>
    %34 = vector.broadcast %29 : f32 to vector<32x128xf32>
    %35 = arith.mulf %34, %33 : vector<32x128xf32>
    %36 = arith.addf %28, %35 : vector<32x128xf32>
    %c0_18 = arith.constant 0 : index
    %c3 = arith.constant 3 : index
    %37 = memref.load %arg2[%c0_18, %c3] : memref<6x10xf32, #tpu.memory_space<smem>>
    %c0_19 = arith.constant 0 : index
    %c3_20 = arith.constant 3 : index
    %38 = memref.load %arg1[%c0_19, %c3_20] : memref<6x10xf32, #tpu.memory_space<smem>>
    %39 = vector.broadcast %38 : f32 to vector<32x128xf32>
    %40 = arith.subf %11, %39 : vector<32x128xf32>
    %41 = math.absf %40 : vector<32x128xf32>
    %42 = vector.broadcast %37 : f32 to vector<32x128xf32>
    %43 = arith.mulf %42, %41 : vector<32x128xf32>
    %44 = arith.addf %36, %43 : vector<32x128xf32>
    %c0_21 = arith.constant 0 : index
    %c4 = arith.constant 4 : index
    %45 = memref.load %arg2[%c0_21, %c4] : memref<6x10xf32, #tpu.memory_space<smem>>
    %c0_22 = arith.constant 0 : index
    %c4_23 = arith.constant 4 : index
    %46 = memref.load %arg1[%c0_22, %c4_23] : memref<6x10xf32, #tpu.memory_space<smem>>
    %47 = vector.broadcast %46 : f32 to vector<32x128xf32>
    %48 = arith.subf %11, %47 : vector<32x128xf32>
    %49 = math.absf %48 : vector<32x128xf32>
    %50 = vector.broadcast %45 : f32 to vector<32x128xf32>
    %51 = arith.mulf %50, %49 : vector<32x128xf32>
    %52 = arith.addf %44, %51 : vector<32x128xf32>
    %c0_24 = arith.constant 0 : index
    %c5 = arith.constant 5 : index
    %53 = memref.load %arg2[%c0_24, %c5] : memref<6x10xf32, #tpu.memory_space<smem>>
    %c0_25 = arith.constant 0 : index
    %c5_26 = arith.constant 5 : index
    %54 = memref.load %arg1[%c0_25, %c5_26] : memref<6x10xf32, #tpu.memory_space<smem>>
    %55 = vector.broadcast %54 : f32 to vector<32x128xf32>
    %56 = arith.subf %11, %55 : vector<32x128xf32>
    %57 = math.absf %56 : vector<32x128xf32>
    %58 = vector.broadcast %53 : f32 to vector<32x128xf32>
    %59 = arith.mulf %58, %57 : vector<32x128xf32>
    %60 = arith.addf %52, %59 : vector<32x128xf32>
    %c0_27 = arith.constant 0 : index
    %c6 = arith.constant 6 : index
    %61 = memref.load %arg2[%c0_27, %c6] : memref<6x10xf32, #tpu.memory_space<smem>>
    %c0_28 = arith.constant 0 : index
    %c6_29 = arith.constant 6 : index
    %62 = memref.load %arg1[%c0_28, %c6_29] : memref<6x10xf32, #tpu.memory_space<smem>>
    %63 = vector.broadcast %62 : f32 to vector<32x128xf32>
    %64 = arith.subf %11, %63 : vector<32x128xf32>
    %65 = math.absf %64 : vector<32x128xf32>
    %66 = vector.broadcast %61 : f32 to vector<32x128xf32>
    %67 = arith.mulf %66, %65 : vector<32x128xf32>
    %68 = arith.addf %60, %67 : vector<32x128xf32>
    %c0_30 = arith.constant 0 : index
    %c7 = arith.constant 7 : index
    %69 = memref.load %arg2[%c0_30, %c7] : memref<6x10xf32, #tpu.memory_space<smem>>
    %c0_31 = arith.constant 0 : index
    %c7_32 = arith.constant 7 : index
    %70 = memref.load %arg1[%c0_31, %c7_32] : memref<6x10xf32, #tpu.memory_space<smem>>
    %71 = vector.broadcast %70 : f32 to vector<32x128xf32>
    %72 = arith.subf %11, %71 : vector<32x128xf32>
    %73 = math.absf %72 : vector<32x128xf32>
    %74 = vector.broadcast %69 : f32 to vector<32x128xf32>
    %75 = arith.mulf %74, %73 : vector<32x128xf32>
    %76 = arith.addf %68, %75 : vector<32x128xf32>
    %c0_33 = arith.constant 0 : index
    %c8 = arith.constant 8 : index
    %77 = memref.load %arg2[%c0_33, %c8] : memref<6x10xf32, #tpu.memory_space<smem>>
    %c0_34 = arith.constant 0 : index
    %c8_35 = arith.constant 8 : index
    %78 = memref.load %arg1[%c0_34, %c8_35] : memref<6x10xf32, #tpu.memory_space<smem>>
    %79 = vector.broadcast %78 : f32 to vector<32x128xf32>
    %80 = arith.subf %11, %79 : vector<32x128xf32>
    %81 = math.absf %80 : vector<32x128xf32>
    %82 = vector.broadcast %77 : f32 to vector<32x128xf32>
    %83 = arith.mulf %82, %81 : vector<32x128xf32>
    %84 = arith.addf %76, %83 : vector<32x128xf32>
    %c0_36 = arith.constant 0 : index
    %c9 = arith.constant 9 : index
    %85 = memref.load %arg2[%c0_36, %c9] : memref<6x10xf32, #tpu.memory_space<smem>>
    %c0_37 = arith.constant 0 : index
    %c9_38 = arith.constant 9 : index
    %86 = memref.load %arg1[%c0_37, %c9_38] : memref<6x10xf32, #tpu.memory_space<smem>>
    %87 = vector.broadcast %86 : f32 to vector<32x128xf32>
    %88 = arith.subf %11, %87 : vector<32x128xf32>
    %89 = math.absf %88 : vector<32x128xf32>
    %90 = vector.broadcast %85 : f32 to vector<32x128xf32>
    %91 = arith.mulf %90, %89 : vector<32x128xf32>
    %92 = arith.addf %84, %91 : vector<32x128xf32>
    %93 = vector.extract_strided_slice %6 {offsets = [32, 0], sizes = [32, 128], strides = [1, 1]} : vector<64x128xf32> to vector<32x128xf32>
    %cst_39 = arith.constant -1.000000e+00 : f32
    %cst_40 = arith.constant 1.000000e+00 : f32
    %94 = vector.broadcast %cst_39 : f32 to vector<32x128xf32>
    %95 = arith.maximumf %94, %93 : vector<32x128xf32>
    %96 = vector.broadcast %cst_40 : f32 to vector<32x128xf32>
    %97 = arith.minimumf %96, %95 : vector<32x128xf32>
    %cst_41 = arith.constant 0.000000e+00 : f32
    %98 = vector.broadcast %cst_41 : f32 to vector<32x128xf32>
    %c1_42 = arith.constant 1 : index
    %c0_43 = arith.constant 0 : index
    %99 = memref.load %arg2[%c1_42, %c0_43] : memref<6x10xf32, #tpu.memory_space<smem>>
    %c1_44 = arith.constant 1 : index
    %c0_45 = arith.constant 0 : index
    %100 = memref.load %arg1[%c1_44, %c0_45] : memref<6x10xf32, #tpu.memory_space<smem>>
    %101 = vector.broadcast %100 : f32 to vector<32x128xf32>
    %102 = arith.subf %97, %101 : vector<32x128xf32>
    %103 = math.absf %102 : vector<32x128xf32>
    %104 = vector.broadcast %99 : f32 to vector<32x128xf32>
    %105 = arith.mulf %104, %103 : vector<32x128xf32>
    %106 = arith.addf %98, %105 : vector<32x128xf32>
    %c1_46 = arith.constant 1 : index
    %c1_47 = arith.constant 1 : index
    %107 = memref.load %arg2[%c1_46, %c1_47] : memref<6x10xf32, #tpu.memory_space<smem>>
    %c1_48 = arith.constant 1 : index
    %c1_49 = arith.constant 1 : index
    %108 = memref.load %arg1[%c1_48, %c1_49] : memref<6x10xf32, #tpu.memory_space<smem>>
    %109 = vector.broadcast %108 : f32 to vector<32x128xf32>
    %110 = arith.subf %97, %109 : vector<32x128xf32>
    %111 = math.absf %110 : vector<32x128xf32>
    %112 = vector.broadcast %107 : f32 to vector<32x128xf32>
    %113 = arith.mulf %112, %111 : vector<32x128xf32>
    %114 = arith.addf %106, %113 : vector<32x128xf32>
    %c1_50 = arith.constant 1 : index
    %c2_51 = arith.constant 2 : index
    %115 = memref.load %arg2[%c1_50, %c2_51] : memref<6x10xf32, #tpu.memory_space<smem>>
    %c1_52 = arith.constant 1 : index
    %c2_53 = arith.constant 2 : index
    %116 = memref.load %arg1[%c1_52, %c2_53] : memref<6x10xf32, #tpu.memory_space<smem>>
    %117 = vector.broadcast %116 : f32 to vector<32x128xf32>
    %118 = arith.subf %97, %117 : vector<32x128xf32>
    %119 = math.absf %118 : vector<32x128xf32>
    %120 = vector.broadcast %115 : f32 to vector<32x128xf32>
    %121 = arith.mulf %120, %119 : vector<32x128xf32>
    %122 = arith.addf %114, %121 : vector<32x128xf32>
    %c1_54 = arith.constant 1 : index
    %c3_55 = arith.constant 3 : index
    %123 = memref.load %arg2[%c1_54, %c3_55] : memref<6x10xf32, #tpu.memory_space<smem>>
    %c1_56 = arith.constant 1 : index
    %c3_57 = arith.constant 3 : index
    %124 = memref.load %arg1[%c1_56, %c3_57] : memref<6x10xf32, #tpu.memory_space<smem>>
    %125 = vector.broadcast %124 : f32 to vector<32x128xf32>
    %126 = arith.subf %97, %125 : vector<32x128xf32>
    %127 = math.absf %126 : vector<32x128xf32>
    %128 = vector.broadcast %123 : f32 to vector<32x128xf32>
    %129 = arith.mulf %128, %127 : vector<32x128xf32>
    %130 = arith.addf %122, %129 : vector<32x128xf32>
    %c1_58 = arith.constant 1 : index
    %c4_59 = arith.constant 4 : index
    %131 = memref.load %arg2[%c1_58, %c4_59] : memref<6x10xf32, #tpu.memory_space<smem>>
    %c1_60 = arith.constant 1 : index
    %c4_61 = arith.constant 4 : index
    %132 = memref.load %arg1[%c1_60, %c4_61] : memref<6x10xf32, #tpu.memory_space<smem>>
    %133 = vector.broadcast %132 : f32 to vector<32x128xf32>
    %134 = arith.subf %97, %133 : vector<32x128xf32>
    %135 = math.absf %134 : vector<32x128xf32>
    %136 = vector.broadcast %131 : f32 to vector<32x128xf32>
    %137 = arith.mulf %136, %135 : vector<32x128xf32>
    %138 = arith.addf %130, %137 : vector<32x128xf32>
    %c1_62 = arith.constant 1 : index
    %c5_63 = arith.constant 5 : index
    %139 = memref.load %arg2[%c1_62, %c5_63] : memref<6x10xf32, #tpu.memory_space<smem>>
    %c1_64 = arith.constant 1 : index
    %c5_65 = arith.constant 5 : index
    %140 = memref.load %arg1[%c1_64, %c5_65] : memref<6x10xf32, #tpu.memory_space<smem>>
    %141 = vector.broadcast %140 : f32 to vector<32x128xf32>
    %142 = arith.subf %97, %141 : vector<32x128xf32>
    %143 = math.absf %142 : vector<32x128xf32>
    %144 = vector.broadcast %139 : f32 to vector<32x128xf32>
    %145 = arith.mulf %144, %143 : vector<32x128xf32>
    %146 = arith.addf %138, %145 : vector<32x128xf32>
    %c1_66 = arith.constant 1 : index
    %c6_67 = arith.constant 6 : index
    %147 = memref.load %arg2[%c1_66, %c6_67] : memref<6x10xf32, #tpu.memory_space<smem>>
    %c1_68 = arith.constant 1 : index
    %c6_69 = arith.constant 6 : index
    %148 = memref.load %arg1[%c1_68, %c6_69] : memref<6x10xf32, #tpu.memory_space<smem>>
    %149 = vector.broadcast %148 : f32 to vector<32x128xf32>
    %150 = arith.subf %97, %149 : vector<32x128xf32>
    %151 = math.absf %150 : vector<32x128xf32>
    %152 = vector.broadcast %147 : f32 to vector<32x128xf32>
    %153 = arith.mulf %152, %151 : vector<32x128xf32>
    %154 = arith.addf %146, %153 : vector<32x128xf32>
    %c1_70 = arith.constant 1 : index
    %c7_71 = arith.constant 7 : index
    %155 = memref.load %arg2[%c1_70, %c7_71] : memref<6x10xf32, #tpu.memory_space<smem>>
    %c1_72 = arith.constant 1 : index
    %c7_73 = arith.constant 7 : index
    %156 = memref.load %arg1[%c1_72, %c7_73] : memref<6x10xf32, #tpu.memory_space<smem>>
    %157 = vector.broadcast %156 : f32 to vector<32x128xf32>
    %158 = arith.subf %97, %157 : vector<32x128xf32>
    %159 = math.absf %158 : vector<32x128xf32>
    %160 = vector.broadcast %155 : f32 to vector<32x128xf32>
    %161 = arith.mulf %160, %159 : vector<32x128xf32>
    %162 = arith.addf %154, %161 : vector<32x128xf32>
    %c1_74 = arith.constant 1 : index
    %c8_75 = arith.constant 8 : index
    %163 = memref.load %arg2[%c1_74, %c8_75] : memref<6x10xf32, #tpu.memory_space<smem>>
    %c1_76 = arith.constant 1 : index
    %c8_77 = arith.constant 8 : index
    %164 = memref.load %arg1[%c1_76, %c8_77] : memref<6x10xf32, #tpu.memory_space<smem>>
    %165 = vector.broadcast %164 : f32 to vector<32x128xf32>
    %166 = arith.subf %97, %165 : vector<32x128xf32>
    %167 = math.absf %166 : vector<32x128xf32>
    %168 = vector.broadcast %163 : f32 to vector<32x128xf32>
    %169 = arith.mulf %168, %167 : vector<32x128xf32>
    %170 = arith.addf %162, %169 : vector<32x128xf32>
    %c1_78 = arith.constant 1 : index
    %c9_79 = arith.constant 9 : index
    %171 = memref.load %arg2[%c1_78, %c9_79] : memref<6x10xf32, #tpu.memory_space<smem>>
    %c1_80 = arith.constant 1 : index
    %c9_81 = arith.constant 9 : index
    %172 = memref.load %arg1[%c1_80, %c9_81] : memref<6x10xf32, #tpu.memory_space<smem>>
    %173 = vector.broadcast %172 : f32 to vector<32x128xf32>
    %174 = arith.subf %97, %173 : vector<32x128xf32>
    %175 = math.absf %174 : vector<32x128xf32>
    %176 = vector.broadcast %171 : f32 to vector<32x128xf32>
    %177 = arith.mulf %176, %175 : vector<32x128xf32>
    %178 = arith.addf %170, %177 : vector<32x128xf32>
    %179 = arith.addf %92, %178 : vector<32x128xf32>
    %c0_82 = arith.constant 0 : index
    %c0_83 = arith.constant 0 : index
    %180 = vector.load %arg6[%c0_82, %c0_83] : memref<64x32xf32, #tpu.memory_space<vmem>>, vector<64x32xf32>
    %cst_84 = arith.constant dense<0.000000e+00> : vector<64x128xf32>
    %181 = tpu.matmul %180, %179, %cst_84 {dimension_numbers = #tpu.dot_dimension_numbers<[1], [0], [0], [1], [0, 0, 1, 1], [], []>} : vector<64x32xf32>, vector<32x128xf32>, vector<64x128xf32> -> vector<64x128xf32>
    %c0_85 = arith.constant 0 : index
    %c0_86 = arith.constant 0 : index
    %182 = vector.load %arg7[%c0_85, %c0_86] : memref<64x1xf32, #tpu.memory_space<vmem>>, vector<64x1xf32>
    %183 = vector.broadcast %182 : vector<64x1xf32> to vector<64x128xf32>
    %184 = arith.addf %181, %183 : vector<64x128xf32>
    %185 = vector.extract_strided_slice %184 {offsets = [0, 0], sizes = [32, 128], strides = [1, 1]} : vector<64x128xf32> to vector<32x128xf32>
    %cst_87 = arith.constant -1.000000e+00 : f32
    %cst_88 = arith.constant 1.000000e+00 : f32
    %186 = vector.broadcast %cst_87 : f32 to vector<32x128xf32>
    %187 = arith.maximumf %186, %185 : vector<32x128xf32>
    %188 = vector.broadcast %cst_88 : f32 to vector<32x128xf32>
    %189 = arith.minimumf %188, %187 : vector<32x128xf32>
    %cst_89 = arith.constant 0.000000e+00 : f32
    %190 = vector.broadcast %cst_89 : f32 to vector<32x128xf32>
    %c2_90 = arith.constant 2 : index
    %c0_91 = arith.constant 0 : index
    %191 = memref.load %arg2[%c2_90, %c0_91] : memref<6x10xf32, #tpu.memory_space<smem>>
    %c2_92 = arith.constant 2 : index
    %c0_93 = arith.constant 0 : index
    %192 = memref.load %arg1[%c2_92, %c0_93] : memref<6x10xf32, #tpu.memory_space<smem>>
    %193 = vector.broadcast %192 : f32 to vector<32x128xf32>
    %194 = arith.subf %189, %193 : vector<32x128xf32>
    %195 = math.absf %194 : vector<32x128xf32>
    %196 = vector.broadcast %191 : f32 to vector<32x128xf32>
    %197 = arith.mulf %196, %195 : vector<32x128xf32>
    %198 = arith.addf %190, %197 : vector<32x128xf32>
    %c2_94 = arith.constant 2 : index
    %c1_95 = arith.constant 1 : index
    %199 = memref.load %arg2[%c2_94, %c1_95] : memref<6x10xf32, #tpu.memory_space<smem>>
    %c2_96 = arith.constant 2 : index
    %c1_97 = arith.constant 1 : index
    %200 = memref.load %arg1[%c2_96, %c1_97] : memref<6x10xf32, #tpu.memory_space<smem>>
    %201 = vector.broadcast %200 : f32 to vector<32x128xf32>
    %202 = arith.subf %189, %201 : vector<32x128xf32>
    %203 = math.absf %202 : vector<32x128xf32>
    %204 = vector.broadcast %199 : f32 to vector<32x128xf32>
    %205 = arith.mulf %204, %203 : vector<32x128xf32>
    %206 = arith.addf %198, %205 : vector<32x128xf32>
    %c2_98 = arith.constant 2 : index
    %c2_99 = arith.constant 2 : index
    %207 = memref.load %arg2[%c2_98, %c2_99] : memref<6x10xf32, #tpu.memory_space<smem>>
    %c2_100 = arith.constant 2 : index
    %c2_101 = arith.constant 2 : index
    %208 = memref.load %arg1[%c2_100, %c2_101] : memref<6x10xf32, #tpu.memory_space<smem>>
    %209 = vector.broadcast %208 : f32 to vector<32x128xf32>
    %210 = arith.subf %189, %209 : vector<32x128xf32>
    %211 = math.absf %210 : vector<32x128xf32>
    %212 = vector.broadcast %207 : f32 to vector<32x128xf32>
    %213 = arith.mulf %212, %211 : vector<32x128xf32>
    %214 = arith.addf %206, %213 : vector<32x128xf32>
    %c2_102 = arith.constant 2 : index
    %c3_103 = arith.constant 3 : index
    %215 = memref.load %arg2[%c2_102, %c3_103] : memref<6x10xf32, #tpu.memory_space<smem>>
    %c2_104 = arith.constant 2 : index
    %c3_105 = arith.constant 3 : index
    %216 = memref.load %arg1[%c2_104, %c3_105] : memref<6x10xf32, #tpu.memory_space<smem>>
    %217 = vector.broadcast %216 : f32 to vector<32x128xf32>
    %218 = arith.subf %189, %217 : vector<32x128xf32>
    %219 = math.absf %218 : vector<32x128xf32>
    %220 = vector.broadcast %215 : f32 to vector<32x128xf32>
    %221 = arith.mulf %220, %219 : vector<32x128xf32>
    %222 = arith.addf %214, %221 : vector<32x128xf32>
    %c2_106 = arith.constant 2 : index
    %c4_107 = arith.constant 4 : index
    %223 = memref.load %arg2[%c2_106, %c4_107] : memref<6x10xf32, #tpu.memory_space<smem>>
    %c2_108 = arith.constant 2 : index
    %c4_109 = arith.constant 4 : index
    %224 = memref.load %arg1[%c2_108, %c4_109] : memref<6x10xf32, #tpu.memory_space<smem>>
    %225 = vector.broadcast %224 : f32 to vector<32x128xf32>
    %226 = arith.subf %189, %225 : vector<32x128xf32>
    %227 = math.absf %226 : vector<32x128xf32>
    %228 = vector.broadcast %223 : f32 to vector<32x128xf32>
    %229 = arith.mulf %228, %227 : vector<32x128xf32>
    %230 = arith.addf %222, %229 : vector<32x128xf32>
    %c2_110 = arith.constant 2 : index
    %c5_111 = arith.constant 5 : index
    %231 = memref.load %arg2[%c2_110, %c5_111] : memref<6x10xf32, #tpu.memory_space<smem>>
    %c2_112 = arith.constant 2 : index
    %c5_113 = arith.constant 5 : index
    %232 = memref.load %arg1[%c2_112, %c5_113] : memref<6x10xf32, #tpu.memory_space<smem>>
    %233 = vector.broadcast %232 : f32 to vector<32x128xf32>
    %234 = arith.subf %189, %233 : vector<32x128xf32>
    %235 = math.absf %234 : vector<32x128xf32>
    %236 = vector.broadcast %231 : f32 to vector<32x128xf32>
    %237 = arith.mulf %236, %235 : vector<32x128xf32>
    %238 = arith.addf %230, %237 : vector<32x128xf32>
    %c2_114 = arith.constant 2 : index
    %c6_115 = arith.constant 6 : index
    %239 = memref.load %arg2[%c2_114, %c6_115] : memref<6x10xf32, #tpu.memory_space<smem>>
    %c2_116 = arith.constant 2 : index
    %c6_117 = arith.constant 6 : index
    %240 = memref.load %arg1[%c2_116, %c6_117] : memref<6x10xf32, #tpu.memory_space<smem>>
    %241 = vector.broadcast %240 : f32 to vector<32x128xf32>
    %242 = arith.subf %189, %241 : vector<32x128xf32>
    %243 = math.absf %242 : vector<32x128xf32>
    %244 = vector.broadcast %239 : f32 to vector<32x128xf32>
    %245 = arith.mulf %244, %243 : vector<32x128xf32>
    %246 = arith.addf %238, %245 : vector<32x128xf32>
    %c2_118 = arith.constant 2 : index
    %c7_119 = arith.constant 7 : index
    %247 = memref.load %arg2[%c2_118, %c7_119] : memref<6x10xf32, #tpu.memory_space<smem>>
    %c2_120 = arith.constant 2 : index
    %c7_121 = arith.constant 7 : index
    %248 = memref.load %arg1[%c2_120, %c7_121] : memref<6x10xf32, #tpu.memory_space<smem>>
    %249 = vector.broadcast %248 : f32 to vector<32x128xf32>
    %250 = arith.subf %189, %249 : vector<32x128xf32>
    %251 = math.absf %250 : vector<32x128xf32>
    %252 = vector.broadcast %247 : f32 to vector<32x128xf32>
    %253 = arith.mulf %252, %251 : vector<32x128xf32>
    %254 = arith.addf %246, %253 : vector<32x128xf32>
    %c2_122 = arith.constant 2 : index
    %c8_123 = arith.constant 8 : index
    %255 = memref.load %arg2[%c2_122, %c8_123] : memref<6x10xf32, #tpu.memory_space<smem>>
    %c2_124 = arith.constant 2 : index
    %c8_125 = arith.constant 8 : index
    %256 = memref.load %arg1[%c2_124, %c8_125] : memref<6x10xf32, #tpu.memory_space<smem>>
    %257 = vector.broadcast %256 : f32 to vector<32x128xf32>
    %258 = arith.subf %189, %257 : vector<32x128xf32>
    %259 = math.absf %258 : vector<32x128xf32>
    %260 = vector.broadcast %255 : f32 to vector<32x128xf32>
    %261 = arith.mulf %260, %259 : vector<32x128xf32>
    %262 = arith.addf %254, %261 : vector<32x128xf32>
    %c2_126 = arith.constant 2 : index
    %c9_127 = arith.constant 9 : index
    %263 = memref.load %arg2[%c2_126, %c9_127] : memref<6x10xf32, #tpu.memory_space<smem>>
    %c2_128 = arith.constant 2 : index
    %c9_129 = arith.constant 9 : index
    %264 = memref.load %arg1[%c2_128, %c9_129] : memref<6x10xf32, #tpu.memory_space<smem>>
    %265 = vector.broadcast %264 : f32 to vector<32x128xf32>
    %266 = arith.subf %189, %265 : vector<32x128xf32>
    %267 = math.absf %266 : vector<32x128xf32>
    %268 = vector.broadcast %263 : f32 to vector<32x128xf32>
    %269 = arith.mulf %268, %267 : vector<32x128xf32>
    %270 = arith.addf %262, %269 : vector<32x128xf32>
    %271 = vector.extract_strided_slice %184 {offsets = [32, 0], sizes = [32, 128], strides = [1, 1]} : vector<64x128xf32> to vector<32x128xf32>
    %cst_130 = arith.constant -1.000000e+00 : f32
    %cst_131 = arith.constant 1.000000e+00 : f32
    %272 = vector.broadcast %cst_130 : f32 to vector<32x128xf32>
    %273 = arith.maximumf %272, %271 : vector<32x128xf32>
    %274 = vector.broadcast %cst_131 : f32 to vector<32x128xf32>
    %275 = arith.minimumf %274, %273 : vector<32x128xf32>
    %cst_132 = arith.constant 0.000000e+00 : f32
    %276 = vector.broadcast %cst_132 : f32 to vector<32x128xf32>
    %c3_133 = arith.constant 3 : index
    %c0_134 = arith.constant 0 : index
    %277 = memref.load %arg2[%c3_133, %c0_134] : memref<6x10xf32, #tpu.memory_space<smem>>
    %c3_135 = arith.constant 3 : index
    %c0_136 = arith.constant 0 : index
    %278 = memref.load %arg1[%c3_135, %c0_136] : memref<6x10xf32, #tpu.memory_space<smem>>
    %279 = vector.broadcast %278 : f32 to vector<32x128xf32>
    %280 = arith.subf %275, %279 : vector<32x128xf32>
    %281 = math.absf %280 : vector<32x128xf32>
    %282 = vector.broadcast %277 : f32 to vector<32x128xf32>
    %283 = arith.mulf %282, %281 : vector<32x128xf32>
    %284 = arith.addf %276, %283 : vector<32x128xf32>
    %c3_137 = arith.constant 3 : index
    %c1_138 = arith.constant 1 : index
    %285 = memref.load %arg2[%c3_137, %c1_138] : memref<6x10xf32, #tpu.memory_space<smem>>
    %c3_139 = arith.constant 3 : index
    %c1_140 = arith.constant 1 : index
    %286 = memref.load %arg1[%c3_139, %c1_140] : memref<6x10xf32, #tpu.memory_space<smem>>
    %287 = vector.broadcast %286 : f32 to vector<32x128xf32>
    %288 = arith.subf %275, %287 : vector<32x128xf32>
    %289 = math.absf %288 : vector<32x128xf32>
    %290 = vector.broadcast %285 : f32 to vector<32x128xf32>
    %291 = arith.mulf %290, %289 : vector<32x128xf32>
    %292 = arith.addf %284, %291 : vector<32x128xf32>
    %c3_141 = arith.constant 3 : index
    %c2_142 = arith.constant 2 : index
    %293 = memref.load %arg2[%c3_141, %c2_142] : memref<6x10xf32, #tpu.memory_space<smem>>
    %c3_143 = arith.constant 3 : index
    %c2_144 = arith.constant 2 : index
    %294 = memref.load %arg1[%c3_143, %c2_144] : memref<6x10xf32, #tpu.memory_space<smem>>
    %295 = vector.broadcast %294 : f32 to vector<32x128xf32>
    %296 = arith.subf %275, %295 : vector<32x128xf32>
    %297 = math.absf %296 : vector<32x128xf32>
    %298 = vector.broadcast %293 : f32 to vector<32x128xf32>
    %299 = arith.mulf %298, %297 : vector<32x128xf32>
    %300 = arith.addf %292, %299 : vector<32x128xf32>
    %c3_145 = arith.constant 3 : index
    %c3_146 = arith.constant 3 : index
    %301 = memref.load %arg2[%c3_145, %c3_146] : memref<6x10xf32, #tpu.memory_space<smem>>
    %c3_147 = arith.constant 3 : index
    %c3_148 = arith.constant 3 : index
    %302 = memref.load %arg1[%c3_147, %c3_148] : memref<6x10xf32, #tpu.memory_space<smem>>
    %303 = vector.broadcast %302 : f32 to vector<32x128xf32>
    %304 = arith.subf %275, %303 : vector<32x128xf32>
    %305 = math.absf %304 : vector<32x128xf32>
    %306 = vector.broadcast %301 : f32 to vector<32x128xf32>
    %307 = arith.mulf %306, %305 : vector<32x128xf32>
    %308 = arith.addf %300, %307 : vector<32x128xf32>
    %c3_149 = arith.constant 3 : index
    %c4_150 = arith.constant 4 : index
    %309 = memref.load %arg2[%c3_149, %c4_150] : memref<6x10xf32, #tpu.memory_space<smem>>
    %c3_151 = arith.constant 3 : index
    %c4_152 = arith.constant 4 : index
    %310 = memref.load %arg1[%c3_151, %c4_152] : memref<6x10xf32, #tpu.memory_space<smem>>
    %311 = vector.broadcast %310 : f32 to vector<32x128xf32>
    %312 = arith.subf %275, %311 : vector<32x128xf32>
    %313 = math.absf %312 : vector<32x128xf32>
    %314 = vector.broadcast %309 : f32 to vector<32x128xf32>
    %315 = arith.mulf %314, %313 : vector<32x128xf32>
    %316 = arith.addf %308, %315 : vector<32x128xf32>
    %c3_153 = arith.constant 3 : index
    %c5_154 = arith.constant 5 : index
    %317 = memref.load %arg2[%c3_153, %c5_154] : memref<6x10xf32, #tpu.memory_space<smem>>
    %c3_155 = arith.constant 3 : index
    %c5_156 = arith.constant 5 : index
    %318 = memref.load %arg1[%c3_155, %c5_156] : memref<6x10xf32, #tpu.memory_space<smem>>
    %319 = vector.broadcast %318 : f32 to vector<32x128xf32>
    %320 = arith.subf %275, %319 : vector<32x128xf32>
    %321 = math.absf %320 : vector<32x128xf32>
    %322 = vector.broadcast %317 : f32 to vector<32x128xf32>
    %323 = arith.mulf %322, %321 : vector<32x128xf32>
    %324 = arith.addf %316, %323 : vector<32x128xf32>
    %c3_157 = arith.constant 3 : index
    %c6_158 = arith.constant 6 : index
    %325 = memref.load %arg2[%c3_157, %c6_158] : memref<6x10xf32, #tpu.memory_space<smem>>
    %c3_159 = arith.constant 3 : index
    %c6_160 = arith.constant 6 : index
    %326 = memref.load %arg1[%c3_159, %c6_160] : memref<6x10xf32, #tpu.memory_space<smem>>
    %327 = vector.broadcast %326 : f32 to vector<32x128xf32>
    %328 = arith.subf %275, %327 : vector<32x128xf32>
    %329 = math.absf %328 : vector<32x128xf32>
    %330 = vector.broadcast %325 : f32 to vector<32x128xf32>
    %331 = arith.mulf %330, %329 : vector<32x128xf32>
    %332 = arith.addf %324, %331 : vector<32x128xf32>
    %c3_161 = arith.constant 3 : index
    %c7_162 = arith.constant 7 : index
    %333 = memref.load %arg2[%c3_161, %c7_162] : memref<6x10xf32, #tpu.memory_space<smem>>
    %c3_163 = arith.constant 3 : index
    %c7_164 = arith.constant 7 : index
    %334 = memref.load %arg1[%c3_163, %c7_164] : memref<6x10xf32, #tpu.memory_space<smem>>
    %335 = vector.broadcast %334 : f32 to vector<32x128xf32>
    %336 = arith.subf %275, %335 : vector<32x128xf32>
    %337 = math.absf %336 : vector<32x128xf32>
    %338 = vector.broadcast %333 : f32 to vector<32x128xf32>
    %339 = arith.mulf %338, %337 : vector<32x128xf32>
    %340 = arith.addf %332, %339 : vector<32x128xf32>
    %c3_165 = arith.constant 3 : index
    %c8_166 = arith.constant 8 : index
    %341 = memref.load %arg2[%c3_165, %c8_166] : memref<6x10xf32, #tpu.memory_space<smem>>
    %c3_167 = arith.constant 3 : index
    %c8_168 = arith.constant 8 : index
    %342 = memref.load %arg1[%c3_167, %c8_168] : memref<6x10xf32, #tpu.memory_space<smem>>
    %343 = vector.broadcast %342 : f32 to vector<32x128xf32>
    %344 = arith.subf %275, %343 : vector<32x128xf32>
    %345 = math.absf %344 : vector<32x128xf32>
    %346 = vector.broadcast %341 : f32 to vector<32x128xf32>
    %347 = arith.mulf %346, %345 : vector<32x128xf32>
    %348 = arith.addf %340, %347 : vector<32x128xf32>
    %c3_169 = arith.constant 3 : index
    %c9_170 = arith.constant 9 : index
    %349 = memref.load %arg2[%c3_169, %c9_170] : memref<6x10xf32, #tpu.memory_space<smem>>
    %c3_171 = arith.constant 3 : index
    %c9_172 = arith.constant 9 : index
    %350 = memref.load %arg1[%c3_171, %c9_172] : memref<6x10xf32, #tpu.memory_space<smem>>
    %351 = vector.broadcast %350 : f32 to vector<32x128xf32>
    %352 = arith.subf %275, %351 : vector<32x128xf32>
    %353 = math.absf %352 : vector<32x128xf32>
    %354 = vector.broadcast %349 : f32 to vector<32x128xf32>
    %355 = arith.mulf %354, %353 : vector<32x128xf32>
    %356 = arith.addf %348, %355 : vector<32x128xf32>
    %357 = arith.addf %270, %356 : vector<32x128xf32>
    %c0_173 = arith.constant 0 : index
    %c0_174 = arith.constant 0 : index
    %358 = vector.load %arg8[%c0_173, %c0_174] : memref<2x32xf32, #tpu.memory_space<vmem>>, vector<2x32xf32>
    %cst_175 = arith.constant dense<0.000000e+00> : vector<2x128xf32>
    %359 = tpu.matmul %358, %357, %cst_175 {dimension_numbers = #tpu.dot_dimension_numbers<[1], [0], [0], [1], [0, 0, 1, 1], [], []>} : vector<2x32xf32>, vector<32x128xf32>, vector<2x128xf32> -> vector<2x128xf32>
    %c0_176 = arith.constant 0 : index
    %c0_177 = arith.constant 0 : index
    %360 = vector.load %arg9[%c0_176, %c0_177] : memref<2x1xf32, #tpu.memory_space<vmem>>, vector<2x1xf32>
    %361 = vector.broadcast %360 : vector<2x1xf32> to vector<2x128xf32>
    %362 = arith.addf %359, %361 : vector<2x128xf32>
    %363 = vector.extract_strided_slice %362 {offsets = [0, 0], sizes = [1, 128], strides = [1, 1]} : vector<2x128xf32> to vector<1x128xf32>
    %cst_178 = arith.constant -1.000000e+00 : f32
    %cst_179 = arith.constant 1.000000e+00 : f32
    %364 = vector.broadcast %cst_178 : f32 to vector<1x128xf32>
    %365 = arith.maximumf %364, %363 : vector<1x128xf32>
    %366 = vector.broadcast %cst_179 : f32 to vector<1x128xf32>
    %367 = arith.minimumf %366, %365 : vector<1x128xf32>
    %cst_180 = arith.constant 0.000000e+00 : f32
    %368 = vector.broadcast %cst_180 : f32 to vector<1x128xf32>
    %c4_181 = arith.constant 4 : index
    %c0_182 = arith.constant 0 : index
    %369 = memref.load %arg2[%c4_181, %c0_182] : memref<6x10xf32, #tpu.memory_space<smem>>
    %c4_183 = arith.constant 4 : index
    %c0_184 = arith.constant 0 : index
    %370 = memref.load %arg1[%c4_183, %c0_184] : memref<6x10xf32, #tpu.memory_space<smem>>
    %371 = vector.broadcast %370 : f32 to vector<1x128xf32>
    %372 = arith.subf %367, %371 : vector<1x128xf32>
    %373 = math.absf %372 : vector<1x128xf32>
    %374 = vector.broadcast %369 : f32 to vector<1x128xf32>
    %375 = arith.mulf %374, %373 : vector<1x128xf32>
    %376 = arith.addf %368, %375 : vector<1x128xf32>
    %c4_185 = arith.constant 4 : index
    %c1_186 = arith.constant 1 : index
    %377 = memref.load %arg2[%c4_185, %c1_186] : memref<6x10xf32, #tpu.memory_space<smem>>
    %c4_187 = arith.constant 4 : index
    %c1_188 = arith.constant 1 : index
    %378 = memref.load %arg1[%c4_187, %c1_188] : memref<6x10xf32, #tpu.memory_space<smem>>
    %379 = vector.broadcast %378 : f32 to vector<1x128xf32>
    %380 = arith.subf %367, %379 : vector<1x128xf32>
    %381 = math.absf %380 : vector<1x128xf32>
    %382 = vector.broadcast %377 : f32 to vector<1x128xf32>
    %383 = arith.mulf %382, %381 : vector<1x128xf32>
    %384 = arith.addf %376, %383 : vector<1x128xf32>
    %c4_189 = arith.constant 4 : index
    %c2_190 = arith.constant 2 : index
    %385 = memref.load %arg2[%c4_189, %c2_190] : memref<6x10xf32, #tpu.memory_space<smem>>
    %c4_191 = arith.constant 4 : index
    %c2_192 = arith.constant 2 : index
    %386 = memref.load %arg1[%c4_191, %c2_192] : memref<6x10xf32, #tpu.memory_space<smem>>
    %387 = vector.broadcast %386 : f32 to vector<1x128xf32>
    %388 = arith.subf %367, %387 : vector<1x128xf32>
    %389 = math.absf %388 : vector<1x128xf32>
    %390 = vector.broadcast %385 : f32 to vector<1x128xf32>
    %391 = arith.mulf %390, %389 : vector<1x128xf32>
    %392 = arith.addf %384, %391 : vector<1x128xf32>
    %c4_193 = arith.constant 4 : index
    %c3_194 = arith.constant 3 : index
    %393 = memref.load %arg2[%c4_193, %c3_194] : memref<6x10xf32, #tpu.memory_space<smem>>
    %c4_195 = arith.constant 4 : index
    %c3_196 = arith.constant 3 : index
    %394 = memref.load %arg1[%c4_195, %c3_196] : memref<6x10xf32, #tpu.memory_space<smem>>
    %395 = vector.broadcast %394 : f32 to vector<1x128xf32>
    %396 = arith.subf %367, %395 : vector<1x128xf32>
    %397 = math.absf %396 : vector<1x128xf32>
    %398 = vector.broadcast %393 : f32 to vector<1x128xf32>
    %399 = arith.mulf %398, %397 : vector<1x128xf32>
    %400 = arith.addf %392, %399 : vector<1x128xf32>
    %c4_197 = arith.constant 4 : index
    %c4_198 = arith.constant 4 : index
    %401 = memref.load %arg2[%c4_197, %c4_198] : memref<6x10xf32, #tpu.memory_space<smem>>
    %c4_199 = arith.constant 4 : index
    %c4_200 = arith.constant 4 : index
    %402 = memref.load %arg1[%c4_199, %c4_200] : memref<6x10xf32, #tpu.memory_space<smem>>
    %403 = vector.broadcast %402 : f32 to vector<1x128xf32>
    %404 = arith.subf %367, %403 : vector<1x128xf32>
    %405 = math.absf %404 : vector<1x128xf32>
    %406 = vector.broadcast %401 : f32 to vector<1x128xf32>
    %407 = arith.mulf %406, %405 : vector<1x128xf32>
    %408 = arith.addf %400, %407 : vector<1x128xf32>
    %c4_201 = arith.constant 4 : index
    %c5_202 = arith.constant 5 : index
    %409 = memref.load %arg2[%c4_201, %c5_202] : memref<6x10xf32, #tpu.memory_space<smem>>
    %c4_203 = arith.constant 4 : index
    %c5_204 = arith.constant 5 : index
    %410 = memref.load %arg1[%c4_203, %c5_204] : memref<6x10xf32, #tpu.memory_space<smem>>
    %411 = vector.broadcast %410 : f32 to vector<1x128xf32>
    %412 = arith.subf %367, %411 : vector<1x128xf32>
    %413 = math.absf %412 : vector<1x128xf32>
    %414 = vector.broadcast %409 : f32 to vector<1x128xf32>
    %415 = arith.mulf %414, %413 : vector<1x128xf32>
    %416 = arith.addf %408, %415 : vector<1x128xf32>
    %c4_205 = arith.constant 4 : index
    %c6_206 = arith.constant 6 : index
    %417 = memref.load %arg2[%c4_205, %c6_206] : memref<6x10xf32, #tpu.memory_space<smem>>
    %c4_207 = arith.constant 4 : index
    %c6_208 = arith.constant 6 : index
    %418 = memref.load %arg1[%c4_207, %c6_208] : memref<6x10xf32, #tpu.memory_space<smem>>
    %419 = vector.broadcast %418 : f32 to vector<1x128xf32>
    %420 = arith.subf %367, %419 : vector<1x128xf32>
    %421 = math.absf %420 : vector<1x128xf32>
    %422 = vector.broadcast %417 : f32 to vector<1x128xf32>
    %423 = arith.mulf %422, %421 : vector<1x128xf32>
    %424 = arith.addf %416, %423 : vector<1x128xf32>
    %c4_209 = arith.constant 4 : index
    %c7_210 = arith.constant 7 : index
    %425 = memref.load %arg2[%c4_209, %c7_210] : memref<6x10xf32, #tpu.memory_space<smem>>
    %c4_211 = arith.constant 4 : index
    %c7_212 = arith.constant 7 : index
    %426 = memref.load %arg1[%c4_211, %c7_212] : memref<6x10xf32, #tpu.memory_space<smem>>
    %427 = vector.broadcast %426 : f32 to vector<1x128xf32>
    %428 = arith.subf %367, %427 : vector<1x128xf32>
    %429 = math.absf %428 : vector<1x128xf32>
    %430 = vector.broadcast %425 : f32 to vector<1x128xf32>
    %431 = arith.mulf %430, %429 : vector<1x128xf32>
    %432 = arith.addf %424, %431 : vector<1x128xf32>
    %c4_213 = arith.constant 4 : index
    %c8_214 = arith.constant 8 : index
    %433 = memref.load %arg2[%c4_213, %c8_214] : memref<6x10xf32, #tpu.memory_space<smem>>
    %c4_215 = arith.constant 4 : index
    %c8_216 = arith.constant 8 : index
    %434 = memref.load %arg1[%c4_215, %c8_216] : memref<6x10xf32, #tpu.memory_space<smem>>
    %435 = vector.broadcast %434 : f32 to vector<1x128xf32>
    %436 = arith.subf %367, %435 : vector<1x128xf32>
    %437 = math.absf %436 : vector<1x128xf32>
    %438 = vector.broadcast %433 : f32 to vector<1x128xf32>
    %439 = arith.mulf %438, %437 : vector<1x128xf32>
    %440 = arith.addf %432, %439 : vector<1x128xf32>
    %c4_217 = arith.constant 4 : index
    %c9_218 = arith.constant 9 : index
    %441 = memref.load %arg2[%c4_217, %c9_218] : memref<6x10xf32, #tpu.memory_space<smem>>
    %c4_219 = arith.constant 4 : index
    %c9_220 = arith.constant 9 : index
    %442 = memref.load %arg1[%c4_219, %c9_220] : memref<6x10xf32, #tpu.memory_space<smem>>
    %443 = vector.broadcast %442 : f32 to vector<1x128xf32>
    %444 = arith.subf %367, %443 : vector<1x128xf32>
    %445 = math.absf %444 : vector<1x128xf32>
    %446 = vector.broadcast %441 : f32 to vector<1x128xf32>
    %447 = arith.mulf %446, %445 : vector<1x128xf32>
    %448 = arith.addf %440, %447 : vector<1x128xf32>
    %449 = vector.extract_strided_slice %362 {offsets = [1, 0], sizes = [1, 128], strides = [1, 1]} : vector<2x128xf32> to vector<1x128xf32>
    %cst_221 = arith.constant -1.000000e+00 : f32
    %cst_222 = arith.constant 1.000000e+00 : f32
    %450 = vector.broadcast %cst_221 : f32 to vector<1x128xf32>
    %451 = arith.maximumf %450, %449 : vector<1x128xf32>
    %452 = vector.broadcast %cst_222 : f32 to vector<1x128xf32>
    %453 = arith.minimumf %452, %451 : vector<1x128xf32>
    %cst_223 = arith.constant 0.000000e+00 : f32
    %454 = vector.broadcast %cst_223 : f32 to vector<1x128xf32>
    %c5_224 = arith.constant 5 : index
    %c0_225 = arith.constant 0 : index
    %455 = memref.load %arg2[%c5_224, %c0_225] : memref<6x10xf32, #tpu.memory_space<smem>>
    %c5_226 = arith.constant 5 : index
    %c0_227 = arith.constant 0 : index
    %456 = memref.load %arg1[%c5_226, %c0_227] : memref<6x10xf32, #tpu.memory_space<smem>>
    %457 = vector.broadcast %456 : f32 to vector<1x128xf32>
    %458 = arith.subf %453, %457 : vector<1x128xf32>
    %459 = math.absf %458 : vector<1x128xf32>
    %460 = vector.broadcast %455 : f32 to vector<1x128xf32>
    %461 = arith.mulf %460, %459 : vector<1x128xf32>
    %462 = arith.addf %454, %461 : vector<1x128xf32>
    %c5_228 = arith.constant 5 : index
    %c1_229 = arith.constant 1 : index
    %463 = memref.load %arg2[%c5_228, %c1_229] : memref<6x10xf32, #tpu.memory_space<smem>>
    %c5_230 = arith.constant 5 : index
    %c1_231 = arith.constant 1 : index
    %464 = memref.load %arg1[%c5_230, %c1_231] : memref<6x10xf32, #tpu.memory_space<smem>>
    %465 = vector.broadcast %464 : f32 to vector<1x128xf32>
    %466 = arith.subf %453, %465 : vector<1x128xf32>
    %467 = math.absf %466 : vector<1x128xf32>
    %468 = vector.broadcast %463 : f32 to vector<1x128xf32>
    %469 = arith.mulf %468, %467 : vector<1x128xf32>
    %470 = arith.addf %462, %469 : vector<1x128xf32>
    %c5_232 = arith.constant 5 : index
    %c2_233 = arith.constant 2 : index
    %471 = memref.load %arg2[%c5_232, %c2_233] : memref<6x10xf32, #tpu.memory_space<smem>>
    %c5_234 = arith.constant 5 : index
    %c2_235 = arith.constant 2 : index
    %472 = memref.load %arg1[%c5_234, %c2_235] : memref<6x10xf32, #tpu.memory_space<smem>>
    %473 = vector.broadcast %472 : f32 to vector<1x128xf32>
    %474 = arith.subf %453, %473 : vector<1x128xf32>
    %475 = math.absf %474 : vector<1x128xf32>
    %476 = vector.broadcast %471 : f32 to vector<1x128xf32>
    %477 = arith.mulf %476, %475 : vector<1x128xf32>
    %478 = arith.addf %470, %477 : vector<1x128xf32>
    %c5_236 = arith.constant 5 : index
    %c3_237 = arith.constant 3 : index
    %479 = memref.load %arg2[%c5_236, %c3_237] : memref<6x10xf32, #tpu.memory_space<smem>>
    %c5_238 = arith.constant 5 : index
    %c3_239 = arith.constant 3 : index
    %480 = memref.load %arg1[%c5_238, %c3_239] : memref<6x10xf32, #tpu.memory_space<smem>>
    %481 = vector.broadcast %480 : f32 to vector<1x128xf32>
    %482 = arith.subf %453, %481 : vector<1x128xf32>
    %483 = math.absf %482 : vector<1x128xf32>
    %484 = vector.broadcast %479 : f32 to vector<1x128xf32>
    %485 = arith.mulf %484, %483 : vector<1x128xf32>
    %486 = arith.addf %478, %485 : vector<1x128xf32>
    %c5_240 = arith.constant 5 : index
    %c4_241 = arith.constant 4 : index
    %487 = memref.load %arg2[%c5_240, %c4_241] : memref<6x10xf32, #tpu.memory_space<smem>>
    %c5_242 = arith.constant 5 : index
    %c4_243 = arith.constant 4 : index
    %488 = memref.load %arg1[%c5_242, %c4_243] : memref<6x10xf32, #tpu.memory_space<smem>>
    %489 = vector.broadcast %488 : f32 to vector<1x128xf32>
    %490 = arith.subf %453, %489 : vector<1x128xf32>
    %491 = math.absf %490 : vector<1x128xf32>
    %492 = vector.broadcast %487 : f32 to vector<1x128xf32>
    %493 = arith.mulf %492, %491 : vector<1x128xf32>
    %494 = arith.addf %486, %493 : vector<1x128xf32>
    %c5_244 = arith.constant 5 : index
    %c5_245 = arith.constant 5 : index
    %495 = memref.load %arg2[%c5_244, %c5_245] : memref<6x10xf32, #tpu.memory_space<smem>>
    %c5_246 = arith.constant 5 : index
    %c5_247 = arith.constant 5 : index
    %496 = memref.load %arg1[%c5_246, %c5_247] : memref<6x10xf32, #tpu.memory_space<smem>>
    %497 = vector.broadcast %496 : f32 to vector<1x128xf32>
    %498 = arith.subf %453, %497 : vector<1x128xf32>
    %499 = math.absf %498 : vector<1x128xf32>
    %500 = vector.broadcast %495 : f32 to vector<1x128xf32>
    %501 = arith.mulf %500, %499 : vector<1x128xf32>
    %502 = arith.addf %494, %501 : vector<1x128xf32>
    %c5_248 = arith.constant 5 : index
    %c6_249 = arith.constant 6 : index
    %503 = memref.load %arg2[%c5_248, %c6_249] : memref<6x10xf32, #tpu.memory_space<smem>>
    %c5_250 = arith.constant 5 : index
    %c6_251 = arith.constant 6 : index
    %504 = memref.load %arg1[%c5_250, %c6_251] : memref<6x10xf32, #tpu.memory_space<smem>>
    %505 = vector.broadcast %504 : f32 to vector<1x128xf32>
    %506 = arith.subf %453, %505 : vector<1x128xf32>
    %507 = math.absf %506 : vector<1x128xf32>
    %508 = vector.broadcast %503 : f32 to vector<1x128xf32>
    %509 = arith.mulf %508, %507 : vector<1x128xf32>
    %510 = arith.addf %502, %509 : vector<1x128xf32>
    %c5_252 = arith.constant 5 : index
    %c7_253 = arith.constant 7 : index
    %511 = memref.load %arg2[%c5_252, %c7_253] : memref<6x10xf32, #tpu.memory_space<smem>>
    %c5_254 = arith.constant 5 : index
    %c7_255 = arith.constant 7 : index
    %512 = memref.load %arg1[%c5_254, %c7_255] : memref<6x10xf32, #tpu.memory_space<smem>>
    %513 = vector.broadcast %512 : f32 to vector<1x128xf32>
    %514 = arith.subf %453, %513 : vector<1x128xf32>
    %515 = math.absf %514 : vector<1x128xf32>
    %516 = vector.broadcast %511 : f32 to vector<1x128xf32>
    %517 = arith.mulf %516, %515 : vector<1x128xf32>
    %518 = arith.addf %510, %517 : vector<1x128xf32>
    %c5_256 = arith.constant 5 : index
    %c8_257 = arith.constant 8 : index
    %519 = memref.load %arg2[%c5_256, %c8_257] : memref<6x10xf32, #tpu.memory_space<smem>>
    %c5_258 = arith.constant 5 : index
    %c8_259 = arith.constant 8 : index
    %520 = memref.load %arg1[%c5_258, %c8_259] : memref<6x10xf32, #tpu.memory_space<smem>>
    %521 = vector.broadcast %520 : f32 to vector<1x128xf32>
    %522 = arith.subf %453, %521 : vector<1x128xf32>
    %523 = math.absf %522 : vector<1x128xf32>
    %524 = vector.broadcast %519 : f32 to vector<1x128xf32>
    %525 = arith.mulf %524, %523 : vector<1x128xf32>
    %526 = arith.addf %518, %525 : vector<1x128xf32>
    %c5_260 = arith.constant 5 : index
    %c9_261 = arith.constant 9 : index
    %527 = memref.load %arg2[%c5_260, %c9_261] : memref<6x10xf32, #tpu.memory_space<smem>>
    %c5_262 = arith.constant 5 : index
    %c9_263 = arith.constant 9 : index
    %528 = memref.load %arg1[%c5_262, %c9_263] : memref<6x10xf32, #tpu.memory_space<smem>>
    %529 = vector.broadcast %528 : f32 to vector<1x128xf32>
    %530 = arith.subf %453, %529 : vector<1x128xf32>
    %531 = math.absf %530 : vector<1x128xf32>
    %532 = vector.broadcast %527 : f32 to vector<1x128xf32>
    %533 = arith.mulf %532, %531 : vector<1x128xf32>
    %534 = arith.addf %526, %533 : vector<1x128xf32>
    %535 = arith.addf %448, %534 : vector<1x128xf32>
    %536 = arith.negf %535 : vector<1x128xf32>
    %537 = math.exp %536 : vector<1x128xf32>
    %cst_264 = arith.constant 1.000000e+00 : f32
    %538 = vector.broadcast %cst_264 : f32 to vector<1x128xf32>
    %539 = arith.addf %538, %537 : vector<1x128xf32>
    %540 = arith.divf %538, %539 : vector<1x128xf32>
    %c0_265 = arith.constant 0 : index
    %c0_266 = arith.constant 0 : index
    %541 = vector.load %arg10[%c0_265, %c0_266] : memref<1x128xf32, #tpu.memory_space<vmem>>, vector<1x128xf32>
    tpu.vector_store %arg10[%c0_265, %c0_266], %540 {strides = array<i32>} : memref<1x128xf32, #tpu.memory_space<vmem>>, vector<1x128xf32>,
    return
  }
  func.func @transform_0(%arg0: i32) -> (i32, i32) {
    %c0_i32 = arith.constant 0 : i32
    %c0_i32_0 = arith.constant 0 : i32
    %c0_i32_1 = arith.constant 0 : i32
    return %c0_i32, %c0_i32_0 : i32, i32
  }
  func.func @transform_1(%arg0: i32) -> (i32, i32) {
    %c0_i32 = arith.constant 0 : i32
    %c0_i32_0 = arith.constant 0 : i32
    %c0_i32_1 = arith.constant 0 : i32
    return %c0_i32, %c0_i32_0 : i32, i32
  }
  func.func @transform_2(%arg0: i32) -> (i32, i32) {
    %c0_i32 = arith.constant 0 : i32
    %c0_i32_0 = arith.constant 0 : i32
    return %arg0, %c0_i32 : i32, i32
  }
  func.func @transform_3(%arg0: i32) -> (i32, i32) {
    %c0_i32 = arith.constant 0 : i32
    %c0_i32_0 = arith.constant 0 : i32
    %c0_i32_1 = arith.constant 0 : i32
    return %c0_i32, %c0_i32_0 : i32, i32
  }
  func.func @transform_4(%arg0: i32) -> (i32, i32) {
    %c0_i32 = arith.constant 0 : i32
    %c0_i32_0 = arith.constant 0 : i32
    %c0_i32_1 = arith.constant 0 : i32
    return %c0_i32, %c0_i32_0 : i32, i32
  }
  func.func @transform_5(%arg0: i32) -> (i32, i32) {
    %c0_i32 = arith.constant 0 : i32
    %c0_i32_0 = arith.constant 0 : i32
    %c0_i32_1 = arith.constant 0 : i32
    return %c0_i32, %c0_i32_0 : i32, i32
  }
  func.func @transform_6(%arg0: i32) -> (i32, i32) {
    %c0_i32 = arith.constant 0 : i32
    %c0_i32_0 = arith.constant 0 : i32
    %c0_i32_1 = arith.constant 0 : i32
    return %c0_i32, %c0_i32_0 : i32, i32
  }
  func.func @transform_7(%arg0: i32) -> (i32, i32) {
    %c0_i32 = arith.constant 0 : i32
    %c0_i32_0 = arith.constant 0 : i32
    %c0_i32_1 = arith.constant 0 : i32
    return %c0_i32, %c0_i32_0 : i32, i32
  }
  func.func @transform_8(%arg0: i32) -> (i32, i32) {
    %c0_i32 = arith.constant 0 : i32
    %c0_i32_0 = arith.constant 0 : i32
    %c0_i32_1 = arith.constant 0 : i32
    return %c0_i32, %c0_i32_0 : i32, i32
  }
  func.func @transform_9(%arg0: i32) -> (i32, i32) {
    %c0_i32 = arith.constant 0 : i32
    %c0_i32_0 = arith.constant 0 : i32
    return %c0_i32, %arg0 : i32, i32
  }
}

</mosaic_0001>

<llo_original>
// kernel: tpu_custom_call.1
$region0: #{tpu_custom_call.1}
  #allocation0 [shape = 'u32[]', space=smem, size = 0x4, offset = 0x4, fixed_abs, tag = 'smem constant byte address 0x4 - core index']
  #allocation1 [shape = 'u32[144,128]{1,0:T(1,128)}', space=vmem, size = 0x12000, scoped, tag = 'internal scratch']
  %s0 = inlined_call_operand.vmem [shape: f32[6,10], index: 0, kind: input, shape index: {}]
  %s1 = inlined_call_operand.vmem [shape: f32[6,10], index: 1, kind: input, shape index: {}]
  %s2 = inlined_call_operand.vmem [shape: f32[128,16], index: 2, kind: input, shape index: {}]
  %s3 = inlined_call_operand.vmem [shape: f32[64,16], index: 3, kind: input, shape index: {}]
  %s4 = inlined_call_operand.vmem [shape: f32[64,1], index: 4, kind: input, shape index: {}]
  %s5 = inlined_call_operand.vmem [shape: f32[64,32], index: 5, kind: input, shape index: {}]
  %s6 = inlined_call_operand.vmem [shape: f32[64,1], index: 6, kind: input, shape index: {}]
  %s7 = inlined_call_operand.vmem [shape: f32[2,32], index: 7, kind: input, shape index: {}]
  %s8 = inlined_call_operand.vmem [shape: f32[2,1], index: 8, kind: input, shape index: {}]
  %s9 = inlined_call_operand.hbm [shape: f32[1,128], index: 9, kind: output, shape index: {}]
  %s10 = sld [smem:[#allocation0]]
  $region54: #{tpu_custom_call.1} parent=0
    _
  %s12 = ssub.s32 1, %s10
  %s13 = scalar_select 0, %s12, %s10
  $region1: #{tpu_custom_call.1} parent=0
    #allocation2 [shape = 'u8[4096]{0}', space=smem, size = 0x1000, scoped, tag = 'input window, operand 0, single buffered']
    #allocation3 [shape = 's32[1]{0}', space=sflag, size = 0x4, scoped, tag = 'scoped memory for tpu_custom_call.1']
    #allocation4 [shape = 's32[1]{0}', space=sflag, size = 0x4, scoped, tag = 'scoped memory for tpu_custom_call.1']
    #allocation5 [shape = 'u8[4096]{0}', space=smem, size = 0x1000, scoped, tag = 'input window, operand 1, single buffered']
    #allocation6 [shape = 's32[1]{0}', space=sflag, size = 0x4, scoped, tag = 'scoped memory for tpu_custom_call.1']
    #allocation7 [shape = 'u8[512]{0}', space=vmem, size = 0x400, scoped, tag = 'output window, operand 0, single buffered']
    %14 = vsyncpa [#allocation4], 0
    %15 = vsyncpa [#allocation6], 0
    %16 = vsyncpa [#allocation3], 0
    // Predicated region
    $region2: #{tpu_custom_call.1} parent=1 // pred_check
      _
    $region3: #{tpu_custom_call.1} parent=1 // pred_check_branch
      %18 = sbr.rel (0) target = $region5
    $region4: #{tpu_custom_call.1} parent=1 // pred_region
      %s20 = ssub.s32 128, 128
      %21 = vsyncadd [#allocation4], %s20
      %s23 = sshll.u32 %s0, 4
      %s24 = int_to_ptr.vmem [resolvable:$true] %s23
      %26 = dma.vmem_to_smem %s24, 128, [#allocation2], [#allocation4]
    $region5: #{tpu_custom_call.1} parent=1 // pred_fallthru
      _
    // Predicated region
    $region6: #{tpu_custom_call.1} parent=1 // pred_check
      _
    $region7: #{tpu_custom_call.1} parent=1 // pred_check_branch
      %28 = sbr.rel (0) target = $region9
    $region8: #{tpu_custom_call.1} parent=1 // pred_region
      %s30 = ssub.s32 128, 128
      %31 = vsyncadd [#allocation6], %s30
      %s33 = sshll.u32 %s1, 4
      %s34 = int_to_ptr.vmem [resolvable:$true] %s33
      %36 = dma.vmem_to_smem %s34, 128, [#allocation5], [#allocation6]
    $region9: #{tpu_custom_call.1} parent=1 // pred_fallthru
      _
    // Predicated region
    $region10: #{tpu_custom_call.1} parent=1 // pred_check
      _
    $region11: #{tpu_custom_call.1} parent=1 // pred_check_branch
      %38 = sbr.rel (0) target = $region13
    $region12: #{tpu_custom_call.1} parent=1 // pred_region
      _
    $region13: #{tpu_custom_call.1} parent=1 // pred_fallthru
      _
    // Predicated region
    $region14: #{tpu_custom_call.1} parent=1 // pred_check
      _
    $region15: #{tpu_custom_call.1} parent=1 // pred_check_branch
      %40 = sbr.rel (0) target = $region17
    $region16: #{tpu_custom_call.1} parent=1 // pred_region
      _
    $region17: #{tpu_custom_call.1} parent=1 // pred_fallthru
      _
    // Predicated region
    $region18: #{tpu_custom_call.1} parent=1 // pred_check
      _
    $region19: #{tpu_custom_call.1} parent=1 // pred_check_branch
      %42 = sbr.rel (0) target = $region21
    $region20: #{tpu_custom_call.1} parent=1 // pred_region
      _
    $region21: #{tpu_custom_call.1} parent=1 // pred_fallthru
      _
    // Predicated region
    $region22: #{tpu_custom_call.1} parent=1 // pred_check
      _
    $region23: #{tpu_custom_call.1} parent=1 // pred_check_branch
      %44 = sbr.rel (0) target = $region25
    $region24: #{tpu_custom_call.1} parent=1 // pred_region
      _
    $region25: #{tpu_custom_call.1} parent=1 // pred_fallthru
      _
    // Predicated region
    $region26: #{tpu_custom_call.1} parent=1 // pred_check
      _
    $region27: #{tpu_custom_call.1} parent=1 // pred_check_branch
      %46 = sbr.rel (0) target = $region29
    $region28: #{tpu_custom_call.1} parent=1 // pred_region
      _
    $region29: #{tpu_custom_call.1} parent=1 // pred_fallthru
      _
    // Predicated region
    $region30: #{tpu_custom_call.1} parent=1 // pred_check
      _
    $region31: #{tpu_custom_call.1} parent=1 // pred_check_branch
      %48 = sbr.rel (0) target = $region33
    $region32: #{tpu_custom_call.1} parent=1 // pred_region
      _
    $region33: #{tpu_custom_call.1} parent=1 // pred_fallthru
      _
    // Predicated region
    $region34: #{tpu_custom_call.1} parent=1 // pred_check
      _
    $region35: #{tpu_custom_call.1} parent=1 // pred_check_branch
      %50 = sbr.rel (0) target = $region37
    $region36: #{tpu_custom_call.1} parent=1 // pred_region
      _
    $region37: #{tpu_custom_call.1} parent=1 // pred_fallthru
      _
    // Predicated region
    $region38: #{tpu_custom_call.1} parent=1 // pred_check
      _
    $region39: #{tpu_custom_call.1} parent=1 // pred_check_branch
      %52 = sbr.rel (0) target = $region41
    $region40: #{tpu_custom_call.1} parent=1 // pred_region
      %53 = dma.done [#allocation4], 128
    $region41: #{tpu_custom_call.1} parent=1 // pred_fallthru
      _
    // Predicated region
    $region42: #{tpu_custom_call.1} parent=1 // pred_check
      _
    $region43: #{tpu_custom_call.1} parent=1 // pred_check_branch
      %55 = sbr.rel (0) target = $region45
    $region44: #{tpu_custom_call.1} parent=1 // pred_region
      %56 = dma.done [#allocation6], 128
    $region45: #{tpu_custom_call.1} parent=1 // pred_fallthru
      _
    %57 = sfence
    %v58 = vld [vmem:[%s2] sm:$0xff]
    %v59 = vld [vmem:[%s2 + $0x8] sm:$0xff]
    %v60 = vld [vmem:[%s2 + $0x10] sm:$0xff]
    %v61 = vld [vmem:[%s2 + $0x18] sm:$0xff]
    %v62 = vld [vmem:[%s2 + $0x20] sm:$0xff]
    %v63 = vld [vmem:[%s2 + $0x28] sm:$0xff]
    %v64 = vld [vmem:[%s2 + $0x30] sm:$0xff]
    %v65 = vld [vmem:[%s2 + $0x38] sm:$0xff]
    %v66 = vld [vmem:[%s2 + $0x40] sm:$0xff]
    %v67 = vld [vmem:[%s2 + $0x48] sm:$0xff]
    %v68 = vld [vmem:[%s2 + $0x50] sm:$0xff]
    %v69 = vld [vmem:[%s2 + $0x58] sm:$0xff]
    %v70 = vld [vmem:[%s2 + $0x60] sm:$0xff]
    %v71 = vld [vmem:[%s2 + $0x68] sm:$0xff]
    %v72 = vld [vmem:[%s2 + $0x70] sm:$0xff]
    %v73 = vld [vmem:[%s2 + $0x78] sm:$0xff]
    %v74 = vld [vmem:[%s3] sm:$0xff]
    %v75 = vld [vmem:[%s3 + $0x8] sm:$0xff]
    %v76 = vld [vmem:[%s3 + $0x10] sm:$0xff]
    %v77 = vld [vmem:[%s3 + $0x18] sm:$0xff]
    %v78 = vld [vmem:[%s3 + $0x20] sm:$0xff]
    %v79 = vld [vmem:[%s3 + $0x28] sm:$0xff]
    %v80 = vld [vmem:[%s3 + $0x30] sm:$0xff]
    %v81 = vld [vmem:[%s3 + $0x38] sm:$0xff]
    %v82 = vld [vmem:[%s4] sm:$0xff]
    %v83 = vld [vmem:[%s4 + $0x8] sm:$0xff]
    %v84 = vld [vmem:[%s4 + $0x10] sm:$0xff]
    %v85 = vld [vmem:[%s4 + $0x18] sm:$0xff]
    %v86 = vld [vmem:[%s4 + $0x20] sm:$0xff]
    %v87 = vld [vmem:[%s4 + $0x28] sm:$0xff]
    %v88 = vld [vmem:[%s4 + $0x30] sm:$0xff]
    %v89 = vld [vmem:[%s4 + $0x38] sm:$0xff]
    %91 = vset.pattern.permute.xlu0 0
    %92 = vperm.xlu0 %91, %v82
    %v93 = vpop.permute.xlu0 %92
    %96 = vset.pattern.permute.xlu0 0
    %97 = vperm.xlu0 %96, %v83
    %v98 = vpop.permute.xlu0 %97
    %101 = vset.pattern.permute.xlu0 0
    %102 = vperm.xlu0 %101, %v84
    %v103 = vpop.permute.xlu0 %102
    %106 = vset.pattern.permute.xlu0 0
    %107 = vperm.xlu0 %106, %v85
    %v108 = vpop.permute.xlu0 %107
    %111 = vset.pattern.permute.xlu0 0
    %112 = vperm.xlu0 %111, %v86
    %v113 = vpop.permute.xlu0 %112
    %116 = vset.pattern.permute.xlu0 0
    %117 = vperm.xlu0 %116, %v87
    %v118 = vpop.permute.xlu0 %117
    %121 = vset.pattern.permute.xlu0 0
    %122 = vperm.xlu0 %121, %v88
    %v123 = vpop.permute.xlu0 %122
    %126 = vset.pattern.permute.xlu0 0
    %127 = vperm.xlu0 %126, %v89
    %v128 = vpop.permute.xlu0 %127
    %vm130 = vcmask 130048
    %v132 = vsel %vm130, %v74, 0
    %v135 = vsel %vm130, %v75, 0
    %v138 = vsel %vm130, %v76, 0
    %v141 = vsel %vm130, %v77, 0
    %v144 = vsel %vm130, %v78, 0
    %v147 = vsel %vm130, %v79, 0
    %v150 = vsel %vm130, %v80, 0
    %v153 = vsel %vm130, %v81, 0
    %v156 = vsel %vm130, %v58, 0
    %v159 = vsel %vm130, %v59, 0
    %v162 = vsel %vm130, %v60, 0
    %v165 = vsel %vm130, %v61, 0
    %v168 = vsel %vm130, %v62, 0
    %v171 = vsel %vm130, %v63, 0
    %v174 = vsel %vm130, %v64, 0
    %v177 = vsel %vm130, %v65, 0
    %v180 = vsel %vm130, %v66, 0
    %v183 = vsel %vm130, %v67, 0
    %v186 = vsel %vm130, %v68, 0
    %v189 = vsel %vm130, %v69, 0
    %v192 = vsel %vm130, %v70, 0
    %v195 = vsel %vm130, %v71, 0
    %v198 = vsel %vm130, %v72, 0
    %v201 = vsel %vm130, %v73, 0
    %203 = vmatprep.subr.mxu0 0.0
    %204 = vmatpush1.xpose.msra.mxu0 %v156
    %205 = vmatprep.subr.mxu0 0.0
    %206 = vmatpush1.xpose.msra.mxu0 %v159
    %207 = vmatprep.subr.mxu0 0.0
    %208 = vmatpush1.xpose.msra.mxu0 %v162
    %209 = vmatprep.subr.mxu0 0.0
    %210 = vmatpush1.xpose.msra.mxu0 %v165
    %211 = vmatprep.subr.mxu0 0.0
    %212 = vmatpush1.xpose.msra.mxu0 %v168
    %213 = vmatprep.subr.mxu0 0.0
    %214 = vmatpush1.xpose.msra.mxu0 %v171
    %215 = vmatprep.subr.mxu0 0.0
    %216 = vmatpush1.xpose.msra.mxu0 %v174
    %217 = vmatprep.subr.mxu0 0.0
    %218 = vmatpush1.xpose.msra.mxu0 %v177
    %219 = vmatprep.subr.mxu0 0.0
    %220 = vmatpush1.xpose.msra.mxu0 %v180
    %221 = vmatprep.subr.mxu0 0.0
    %222 = vmatpush1.xpose.msra.mxu0 %v183
    %223 = vmatprep.subr.mxu0 0.0
    %224 = vmatpush1.xpose.msra.mxu0 %v186
    %225 = vmatprep.subr.mxu0 0.0
    %226 = vmatpush1.xpose.msra.mxu0 %v189
    %227 = vmatprep.subr.mxu0 0.0
    %228 = vmatpush1.xpose.msra.mxu0 %v192
    %229 = vmatprep.subr.mxu0 0.0
    %230 = vmatpush1.xpose.msra.mxu0 %v195
    %231 = vmatprep.subr.mxu0 0.0
    %232 = vmatpush1.xpose.msra.mxu0 %v198
    %233 = vmatprep.subr.mxu0 0.0
    %234 = vmatpush1.xpose.msra.mxu0 %v201
    %235 = vmatprep.subr.mxu0 0.0
    %236 = vmatpush1.xpose.msra.mxu0 0.0
    %237 = vmatprep.subr.mxu0 0.0
    %238 = vmatpush1.xpose.msra.mxu0 0.0
    %239 = vmatprep.subr.mxu0 0.0
    %240 = vmatpush1.xpose.msra.mxu0 0.0
    %241 = vmatprep.subr.mxu0 0.0
    %242 = vmatpush1.xpose.msra.mxu0 0.0
    %243 = vmatprep.subr.mxu0 0.0
    %244 = vmatpush1.xpose.msra.mxu0 0.0
    %245 = vmatprep.subr.mxu0 0.0
    %246 = vmatpush1.xpose.msra.mxu0 0.0
    %247 = vmatprep.subr.mxu0 0.0
    %248 = vmatpush1.xpose.msra.mxu0 0.0
    %249 = vmatprep.subr.mxu0 0.0
    %250 = vmatpush1.xpose.msra.mxu0 0.0
    %251 = vmatprep.subr.mxu0 0.0
    %252 = vmatpush1.xpose.msra.mxu0 0.0
    %253 = vmatprep.subr.mxu0 0.0
    %254 = vmatpush1.xpose.msra.mxu0 0.0
    %255 = vmatprep.subr.mxu0 0.0
    %256 = vmatpush1.xpose.msra.mxu0 0.0
    %257 = vmatprep.subr.mxu0 0.0
    %258 = vmatpush1.xpose.msra.mxu0 0.0
    %259 = vmatprep.subr.mxu0 0.0
    %260 = vmatpush1.xpose.msra.mxu0 0.0
    %261 = vmatprep.subr.mxu0 0.0
    %262 = vmatpush1.xpose.msra.mxu0 0.0
    %263 = vmatprep.subr.mxu0 0.0
    %264 = vmatpush1.xpose.msra.mxu0 0.0
    %265 = vmatprep.subr.mxu0 0.0
    %266 = vmatpush1.xpose.msra.mxu0 0.0
    %267 = vmatprep.mubr.f32.mxu0 0.0
    %268 = vmatmul.mubr.f32.gmra.mrb[0].mxu0 %v132
    %v269 = vpop.f32.mrb[0].mxu0
    %v270 = vadd.f32 %v93, %v269
    %v271 = vpop.f32.mrb[0].mxu0
    %272 = vmatprep.mubr.f32.mxu0 0.0
    %273 = vmatmul.mubr.f32.gmra.mrb[0].mxu0 %v135
    %v274 = vpop.f32.mrb[0].mxu0
    %v275 = vadd.f32 %v98, %v274
    %v276 = vpop.f32.mrb[0].mxu0
    %277 = vmatprep.mubr.f32.mxu0 0.0
    %278 = vmatmul.mubr.f32.gmra.mrb[0].mxu0 %v138
    %v279 = vpop.f32.mrb[0].mxu0
    %v280 = vadd.f32 %v103, %v279
    %v281 = vpop.f32.mrb[0].mxu0
    %282 = vmatprep.mubr.f32.mxu0 0.0
    %283 = vmatmul.mubr.f32.gmra.mrb[0].mxu0 %v141
    %v284 = vpop.f32.mrb[0].mxu0
    %v285 = vadd.f32 %v108, %v284
    %v286 = vpop.f32.mrb[0].mxu0
    %287 = vmatprep.mubr.f32.mxu0 0.0
    %288 = vmatmul.mubr.f32.gmra.mrb[0].mxu0 %v144
    %v289 = vpop.f32.mrb[0].mxu0
    %v290 = vadd.f32 %v113, %v289
    %v291 = vpop.f32.mrb[0].mxu0
    %292 = vmatprep.mubr.f32.mxu0 0.0
    %293 = vmatmul.mubr.f32.gmra.mrb[0].mxu0 %v147
    %v294 = vpop.f32.mrb[0].mxu0
    %v295 = vadd.f32 %v118, %v294
    %v296 = vpop.f32.mrb[0].mxu0
    %297 = vmatprep.mubr.f32.mxu0 0.0
    %298 = vmatmul.mubr.f32.gmra.mrb[0].mxu0 %v150
    %v299 = vpop.f32.mrb[0].mxu0
    %v300 = vadd.f32 %v123, %v299
    %v301 = vpop.f32.mrb[0].mxu0
    %302 = vmatprep.mubr.f32.mxu0 0.0
    %303 = vmatmul.mubr.f32.gmra.mrb[0].mxu0 %v153
    %v304 = vpop.f32.mrb[0].mxu0
    %v305 = vadd.f32 %v128, %v304
    %v306 = vpop.f32.mrb[0].mxu0
    %307 = vdwg.mxu0
    %v308 = vmax.f32 %v270, -1.0
    %v309 = vmax.f32 %v275, -1.0
    %v310 = vmax.f32 %v280, -1.0
    %v311 = vmax.f32 %v285, -1.0
    %v312 = vmin.f32 %v308, 1.0
    %v313 = vmin.f32 %v309, 1.0
    %v314 = vmin.f32 %v310, 1.0
    %v315 = vmin.f32 %v311, 1.0
    %s316 = sld [smem:[#allocation5]]
    %s317 = sld [smem:[#allocation2]]
    %v318 = vstv %s317
    %v319 = vsub.f32 %v312, %v318
    %v320 = vsub.f32 %v313, %v318
    %v321 = vsub.f32 %v314, %v318
    %v322 = vsub.f32 %v315, %v318
    %v323 = vand.u32 2147483647, %v319
    %v324 = vand.u32 2147483647, %v320
    %v325 = vand.u32 2147483647, %v321
    %v326 = vand.u32 2147483647, %v322
    %v327 = vstv %s316
    %v328 = vmul.f32 %v327, %v323
    %v329 = vmul.f32 %v327, %v324
    %v330 = vmul.f32 %v327, %v325
    %v331 = vmul.f32 %v327, %v326
    %v332 = vadd.f32 %v328, 0.0
    %v333 = vadd.f32 %v329, 0.0
    %v334 = vadd.f32 %v330, 0.0
    %v335 = vadd.f32 %v331, 0.0
    %s336 = sld [smem:[#allocation5 + $0x1]]
    %s337 = sld [smem:[#allocation2 + $0x1]]
    %v338 = vstv %s337
    %v339 = vsub.f32 %v312, %v338
    %v340 = vsub.f32 %v313, %v338
    %v341 = vsub.f32 %v314, %v338
    %v342 = vsub.f32 %v315, %v338
    %v343 = vand.u32 2147483647, %v339
    %v344 = vand.u32 2147483647, %v340
    %v345 = vand.u32 2147483647, %v341
    %v346 = vand.u32 2147483647, %v342
    %v347 = vstv %s336
    %v348 = vmul.f32 %v347, %v343
    %v349 = vmul.f32 %v347, %v344
    %v350 = vmul.f32 %v347, %v345
    %v351 = vmul.f32 %v347, %v346
    %v352 = vadd.f32 %v332, %v348
    %v353 = vadd.f32 %v333, %v349
    %v354 = vadd.f32 %v334, %v350
    %v355 = vadd.f32 %v335, %v351
    %s356 = sld [smem:[#allocation5 + $0x2]]
    %s357 = sld [smem:[#allocation2 + $0x2]]
    %v358 = vstv %s357
    %v359 = vsub.f32 %v312, %v358
    %v360 = vsub.f32 %v313, %v358
    %v361 = vsub.f32 %v314, %v358
    %v362 = vsub.f32 %v315, %v358
    %v363 = vand.u32 2147483647, %v359
    %v364 = vand.u32 2147483647, %v360
    %v365 = vand.u32 2147483647, %v361
    %v366 = vand.u32 2147483647, %v362
    %v367 = vstv %s356
    %v368 = vmul.f32 %v367, %v363
    %v369 = vmul.f32 %v367, %v364
    %v370 = vmul.f32 %v367, %v365
    %v371 = vmul.f32 %v367, %v366
    %v372 = vadd.f32 %v352, %v368
    %v373 = vadd.f32 %v353, %v369
    %v374 = vadd.f32 %v354, %v370
    %v375 = vadd.f32 %v355, %v371
    %s376 = sld [smem:[#allocation5 + $0x3]]
    %s377 = sld [smem:[#allocation2 + $0x3]]
    %v378 = vstv %s377
    %v379 = vsub.f32 %v312, %v378
    %v380 = vsub.f32 %v313, %v378
    %v381 = vsub.f32 %v314, %v378
    %v382 = vsub.f32 %v315, %v378
    %v383 = vand.u32 2147483647, %v379
    %v384 = vand.u32 2147483647, %v380
    %v385 = vand.u32 2147483647, %v381
    %v386 = vand.u32 2147483647, %v382
    %v387 = vstv %s376
    %v388 = vmul.f32 %v387, %v383
    %v389 = vmul.f32 %v387, %v384
    %v390 = vmul.f32 %v387, %v385
    %v391 = vmul.f32 %v387, %v386
    %v392 = vadd.f32 %v372, %v388
    %v393 = vadd.f32 %v373, %v389
    %v394 = vadd.f32 %v374, %v390
    %v395 = vadd.f32 %v375, %v391
    %s396 = sld [smem:[#allocation5 + $0x4]]
    %s397 = sld [smem:[#allocation2 + $0x4]]
    %v398 = vstv %s397
    %v399 = vsub.f32 %v312, %v398
    %v400 = vsub.f32 %v313, %v398
    %v401 = vsub.f32 %v314, %v398
    %v402 = vsub.f32 %v315, %v398
    %v403 = vand.u32 2147483647, %v399
    %v404 = vand.u32 2147483647, %v400
    %v405 = vand.u32 2147483647, %v401
    %v406 = vand.u32 2147483647, %v402
    %v407 = vstv %s396
    %v408 = vmul.f32 %v407, %v403
    %v409 = vmul.f32 %v407, %v404
    %v410 = vmul.f32 %v407, %v405
    %v411 = vmul.f32 %v407, %v406
    %v412 = vadd.f32 %v392, %v408
    %v413 = vadd.f32 %v393, %v409
    %v414 = vadd.f32 %v394, %v410
    %v415 = vadd.f32 %v395, %v411
    %s416 = sld [smem:[#allocation5 + $0x5]]
    %s417 = sld [smem:[#allocation2 + $0x5]]
    %v418 = vstv %s417
    %v419 = vsub.f32 %v312, %v418
    %v420 = vsub.f32 %v313, %v418
    %v421 = vsub.f32 %v314, %v418
    %v422 = vsub.f32 %v315, %v418
    %v423 = vand.u32 2147483647, %v419
    %v424 = vand.u32 2147483647, %v420
    %v425 = vand.u32 2147483647, %v421
    %v426 = vand.u32 2147483647, %v422
    %v427 = vstv %s416
    %v428 = vmul.f32 %v427, %v423
    %v429 = vmul.f32 %v427, %v424
    %v430 = vmul.f32 %v427, %v425
    %v431 = vmul.f32 %v427, %v426
    %v432 = vadd.f32 %v412, %v428
    %v433 = vadd.f32 %v413, %v429
    %v434 = vadd.f32 %v414, %v430
    %v435 = vadd.f32 %v415, %v431
    %s436 = sld [smem:[#allocation5 + $0x6]]
    %s437 = sld [smem:[#allocation2 + $0x6]]
    %v438 = vstv %s437
    %v439 = vsub.f32 %v312, %v438
    %v440 = vsub.f32 %v313, %v438
    %v441 = vsub.f32 %v314, %v438
    %v442 = vsub.f32 %v315, %v438
    %v443 = vand.u32 2147483647, %v439
    %v444 = vand.u32 2147483647, %v440
    %v445 = vand.u32 2147483647, %v441
    %v446 = vand.u32 2147483647, %v442
    %v447 = vstv %s436
    %v448 = vmul.f32 %v447, %v443
    %v449 = vmul.f32 %v447, %v444
    %v450 = vmul.f32 %v447, %v445
    %v451 = vmul.f32 %v447, %v446
    %v452 = vadd.f32 %v432, %v448
    %v453 = vadd.f32 %v433, %v449
    %v454 = vadd.f32 %v434, %v450
    %v455 = vadd.f32 %v435, %v451
    %s456 = sld [smem:[#allocation5 + $0x7]]
    %s457 = sld [smem:[#allocation2 + $0x7]]
    %v458 = vstv %s457
    %v459 = vsub.f32 %v312, %v458
    %v460 = vsub.f32 %v313, %v458
    %v461 = vsub.f32 %v314, %v458
    %v462 = vsub.f32 %v315, %v458
    %v463 = vand.u32 2147483647, %v459
    %v464 = vand.u32 2147483647, %v460
    %v465 = vand.u32 2147483647, %v461
    %v466 = vand.u32 2147483647, %v462
    %v467 = vstv %s456
    %v468 = vmul.f32 %v467, %v463
    %v469 = vmul.f32 %v467, %v464
    %v470 = vmul.f32 %v467, %v465
    %v471 = vmul.f32 %v467, %v466
    %v472 = vadd.f32 %v452, %v468
    %v473 = vadd.f32 %v453, %v469
    %v474 = vadd.f32 %v454, %v470
    %v475 = vadd.f32 %v455, %v471
    %s476 = sld [smem:[#allocation5 + $0x8]]
    %s477 = sld [smem:[#allocation2 + $0x8]]
    %v478 = vstv %s477
    %v479 = vsub.f32 %v312, %v478
    %v480 = vsub.f32 %v313, %v478
    %v481 = vsub.f32 %v314, %v478
    %v482 = vsub.f32 %v315, %v478
    %v483 = vand.u32 2147483647, %v479
    %v484 = vand.u32 2147483647, %v480
    %v485 = vand.u32 2147483647, %v481
    %v486 = vand.u32 2147483647, %v482
    %v487 = vstv %s476
    %v488 = vmul.f32 %v487, %v483
    %v489 = vmul.f32 %v487, %v484
    %v490 = vmul.f32 %v487, %v485
    %v491 = vmul.f32 %v487, %v486
    %v492 = vadd.f32 %v472, %v488
    %v493 = vadd.f32 %v473, %v489
    %v494 = vadd.f32 %v474, %v490
    %v495 = vadd.f32 %v475, %v491
    %s496 = sld [smem:[#allocation5 + $0x9]]
    %s497 = sld [smem:[#allocation2 + $0x9]]
    %v498 = vstv %s497
    %v499 = vsub.f32 %v312, %v498
    %v500 = vsub.f32 %v313, %v498
    %v501 = vsub.f32 %v314, %v498
    %v502 = vsub.f32 %v315, %v498
    %v503 = vand.u32 2147483647, %v499
    %v504 = vand.u32 2147483647, %v500
    %v505 = vand.u32 2147483647, %v501
    %v506 = vand.u32 2147483647, %v502
    %v507 = vstv %s496
    %v508 = vmul.f32 %v507, %v503
    %v509 = vmul.f32 %v507, %v504
    %v510 = vmul.f32 %v507, %v505
    %v511 = vmul.f32 %v507, %v506
    %v512 = vadd.f32 %v492, %v508
    %v513 = vadd.f32 %v493, %v509
    %v514 = vadd.f32 %v494, %v510
    %v515 = vadd.f32 %v495, %v511
    %v516 = vmax.f32 %v290, -1.0
    %v517 = vmax.f32 %v295, -1.0
    %v518 = vmax.f32 %v300, -1.0
    %v519 = vmax.f32 %v305, -1.0
    %v520 = vmin.f32 %v516, 1.0
    %v521 = vmin.f32 %v517, 1.0
    %v522 = vmin.f32 %v518, 1.0
    %v523 = vmin.f32 %v519, 1.0
    %s524 = sld [smem:[#allocation5 + $0x80]]
    %s525 = sld [smem:[#allocation2 + $0x80]]
    %v526 = vstv %s525
    %v527 = vsub.f32 %v520, %v526
    %v528 = vsub.f32 %v521, %v526
    %v529 = vsub.f32 %v522, %v526
    %v530 = vsub.f32 %v523, %v526
    %v531 = vand.u32 2147483647, %v527
    %v532 = vand.u32 2147483647, %v528
    %v533 = vand.u32 2147483647, %v529
    %v534 = vand.u32 2147483647, %v530
    %v535 = vstv %s524
    %v536 = vmul.f32 %v535, %v531
    %v537 = vmul.f32 %v535, %v532
    %v538 = vmul.f32 %v535, %v533
    %v539 = vmul.f32 %v535, %v534
    %v540 = vadd.f32 %v536, 0.0
    %v541 = vadd.f32 %v537, 0.0
    %v542 = vadd.f32 %v538, 0.0
    %v543 = vadd.f32 %v539, 0.0
    %s544 = sld [smem:[#allocation5 + $0x81]]
    %s545 = sld [smem:[#allocation2 + $0x81]]
    %v546 = vstv %s545
    %v547 = vsub.f32 %v520, %v546
    %v548 = vsub.f32 %v521, %v546
    %v549 = vsub.f32 %v522, %v546
    %v550 = vsub.f32 %v523, %v546
    %v551 = vand.u32 2147483647, %v547
    %v552 = vand.u32 2147483647, %v548
    %v553 = vand.u32 2147483647, %v549
    %v554 = vand.u32 2147483647, %v550
    %v555 = vstv %s544
    %v556 = vmul.f32 %v555, %v551
    %v557 = vmul.f32 %v555, %v552
    %v558 = vmul.f32 %v555, %v553
    %v559 = vmul.f32 %v555, %v554
    %v560 = vadd.f32 %v540, %v556
    %v561 = vadd.f32 %v541, %v557
    %v562 = vadd.f32 %v542, %v558
    %v563 = vadd.f32 %v543, %v559
    %s564 = sld [smem:[#allocation5 + $0x82]]
    %s565 = sld [smem:[#allocation2 + $0x82]]
    %v566 = vstv %s565
    %v567 = vsub.f32 %v520, %v566
    %v568 = vsub.f32 %v521, %v566
    %v569 = vsub.f32 %v522, %v566
    %v570 = vsub.f32 %v523, %v566
    %v571 = vand.u32 2147483647, %v567
    %v572 = vand.u32 2147483647, %v568
    %v573 = vand.u32 2147483647, %v569
    %v574 = vand.u32 2147483647, %v570
    %v575 = vstv %s564
    %v576 = vmul.f32 %v575, %v571
    %v577 = vmul.f32 %v575, %v572
    %v578 = vmul.f32 %v575, %v573
    %v579 = vmul.f32 %v575, %v574
    %v580 = vadd.f32 %v560, %v576
    %v581 = vadd.f32 %v561, %v577
    %v582 = vadd.f32 %v562, %v578
    %v583 = vadd.f32 %v563, %v579
    %s584 = sld [smem:[#allocation5 + $0x83]]
    %s585 = sld [smem:[#allocation2 + $0x83]]
    %v586 = vstv %s585
    %v587 = vsub.f32 %v520, %v586
    %v588 = vsub.f32 %v521, %v586
    %v589 = vsub.f32 %v522, %v586
    %v590 = vsub.f32 %v523, %v586
    %v591 = vand.u32 2147483647, %v587
    %v592 = vand.u32 2147483647, %v588
    %v593 = vand.u32 2147483647, %v589
    %v594 = vand.u32 2147483647, %v590
    %v595 = vstv %s584
    %v596 = vmul.f32 %v595, %v591
    %v597 = vmul.f32 %v595, %v592
    %v598 = vmul.f32 %v595, %v593
    %v599 = vmul.f32 %v595, %v594
    %v600 = vadd.f32 %v580, %v596
    %v601 = vadd.f32 %v581, %v597
    %v602 = vadd.f32 %v582, %v598
    %v603 = vadd.f32 %v583, %v599
    %s604 = sld [smem:[#allocation5 + $0x84]]
    %s605 = sld [smem:[#allocation2 + $0x84]]
    %v606 = vstv %s605
    %v607 = vsub.f32 %v520, %v606
    %v608 = vsub.f32 %v521, %v606
    %v609 = vsub.f32 %v522, %v606
    %v610 = vsub.f32 %v523, %v606
    %v611 = vand.u32 2147483647, %v607
    %v612 = vand.u32 2147483647, %v608
    %v613 = vand.u32 2147483647, %v609
    %v614 = vand.u32 2147483647, %v610
    %v615 = vstv %s604
    %v616 = vmul.f32 %v615, %v611
    %v617 = vmul.f32 %v615, %v612
    %v618 = vmul.f32 %v615, %v613
    %v619 = vmul.f32 %v615, %v614
    %v620 = vadd.f32 %v600, %v616
    %v621 = vadd.f32 %v601, %v617
    %v622 = vadd.f32 %v602, %v618
    %v623 = vadd.f32 %v603, %v619
    %s624 = sld [smem:[#allocation5 + $0x85]]
    %s625 = sld [smem:[#allocation2 + $0x85]]
    %v626 = vstv %s625
    %v627 = vsub.f32 %v520, %v626
    %v628 = vsub.f32 %v521, %v626
    %v629 = vsub.f32 %v522, %v626
    %v630 = vsub.f32 %v523, %v626
    %v631 = vand.u32 2147483647, %v627
    %v632 = vand.u32 2147483647, %v628
    %v633 = vand.u32 2147483647, %v629
    %v634 = vand.u32 2147483647, %v630
    %v635 = vstv %s624
    %v636 = vmul.f32 %v635, %v631
    %v637 = vmul.f32 %v635, %v632
    %v638 = vmul.f32 %v635, %v633
    %v639 = vmul.f32 %v635, %v634
    %v640 = vadd.f32 %v620, %v636
    %v641 = vadd.f32 %v621, %v637
    %v642 = vadd.f32 %v622, %v638
    %v643 = vadd.f32 %v623, %v639
    %s644 = sld [smem:[#allocation5 + $0x86]]
    %s645 = sld [smem:[#allocation2 + $0x86]]
    %v646 = vstv %s645
    %v647 = vsub.f32 %v520, %v646
    %v648 = vsub.f32 %v521, %v646
    %v649 = vsub.f32 %v522, %v646
    %v650 = vsub.f32 %v523, %v646
    %v651 = vand.u32 2147483647, %v647
    %v652 = vand.u32 2147483647, %v648
    %v653 = vand.u32 2147483647, %v649
    %v654 = vand.u32 2147483647, %v650
    %v655 = vstv %s644
    %v656 = vmul.f32 %v655, %v651
    %v657 = vmul.f32 %v655, %v652
    %v658 = vmul.f32 %v655, %v653
    %v659 = vmul.f32 %v655, %v654
    %v660 = vadd.f32 %v640, %v656
    %v661 = vadd.f32 %v641, %v657
    %v662 = vadd.f32 %v642, %v658
    %v663 = vadd.f32 %v643, %v659
    %s664 = sld [smem:[#allocation5 + $0x87]]
    %s665 = sld [smem:[#allocation2 + $0x87]]
    %v666 = vstv %s665
    %v667 = vsub.f32 %v520, %v666
    %v668 = vsub.f32 %v521, %v666
    %v669 = vsub.f32 %v522, %v666
    %v670 = vsub.f32 %v523, %v666
    %v671 = vand.u32 2147483647, %v667
    %v672 = vand.u32 2147483647, %v668
    %v673 = vand.u32 2147483647, %v669
    %v674 = vand.u32 2147483647, %v670
    %v675 = vstv %s664
    %v676 = vmul.f32 %v675, %v671
    %v677 = vmul.f32 %v675, %v672
    %v678 = vmul.f32 %v675, %v673
    %v679 = vmul.f32 %v675, %v674
    %v680 = vadd.f32 %v660, %v676
    %v681 = vadd.f32 %v661, %v677
    %v682 = vadd.f32 %v662, %v678
    %v683 = vadd.f32 %v663, %v679
    %s684 = sld [smem:[#allocation5 + $0x88]]
    %s685 = sld [smem:[#allocation2 + $0x88]]
    %v686 = vstv %s685
    %v687 = vsub.f32 %v520, %v686
    %v688 = vsub.f32 %v521, %v686
    %v689 = vsub.f32 %v522, %v686
    %v690 = vsub.f32 %v523, %v686
    %v691 = vand.u32 2147483647, %v687
    %v692 = vand.u32 2147483647, %v688
    %v693 = vand.u32 2147483647, %v689
    %v694 = vand.u32 2147483647, %v690
    %v695 = vstv %s684
    %v696 = vmul.f32 %v695, %v691
    %v697 = vmul.f32 %v695, %v692
    %v698 = vmul.f32 %v695, %v693
    %v699 = vmul.f32 %v695, %v694
    %v700 = vadd.f32 %v680, %v696
    %v701 = vadd.f32 %v681, %v697
    %v702 = vadd.f32 %v682, %v698
    %v703 = vadd.f32 %v683, %v699
    %s704 = sld [smem:[#allocation5 + $0x89]]
    %s705 = sld [smem:[#allocation2 + $0x89]]
    %v706 = vstv %s705
    %v707 = vsub.f32 %v520, %v706
    %v708 = vsub.f32 %v521, %v706
    %v709 = vsub.f32 %v522, %v706
    %v710 = vsub.f32 %v523, %v706
    %v711 = vand.u32 2147483647, %v707
    %v712 = vand.u32 2147483647, %v708
    %v713 = vand.u32 2147483647, %v709
    %v714 = vand.u32 2147483647, %v710
    %v715 = vstv %s704
    %v716 = vmul.f32 %v715, %v711
    %v717 = vmul.f32 %v715, %v712
    %v718 = vmul.f32 %v715, %v713
    %v719 = vmul.f32 %v715, %v714
    %v720 = vadd.f32 %v700, %v716
    %v721 = vadd.f32 %v701, %v717
    %v722 = vadd.f32 %v702, %v718
    %v723 = vadd.f32 %v703, %v719
    %v724 = vadd.f32 %v512, %v720
    %v725 = vadd.f32 %v513, %v721
    %v726 = vadd.f32 %v514, %v722
    %v727 = vadd.f32 %v515, %v723
    %v728 = vld [vmem:[%s5] sm:$0xff]
    %v729 = vld [vmem:[%s5 + $0x8] sm:$0xff]
    %v730 = vld [vmem:[%s5 + $0x10] sm:$0xff]
    %v731 = vld [vmem:[%s5 + $0x18] sm:$0xff]
    %v732 = vld [vmem:[%s5 + $0x20] sm:$0xff]
    %v733 = vld [vmem:[%s5 + $0x28] sm:$0xff]
    %v734 = vld [vmem:[%s5 + $0x30] sm:$0xff]
    %v735 = vld [vmem:[%s5 + $0x38] sm:$0xff]
    %v736 = vld [vmem:[%s6] sm:$0xff]
    %v737 = vld [vmem:[%s6 + $0x8] sm:$0xff]
    %v738 = vld [vmem:[%s6 + $0x10] sm:$0xff]
    %v739 = vld [vmem:[%s6 + $0x18] sm:$0xff]
    %v740 = vld [vmem:[%s6 + $0x20] sm:$0xff]
    %v741 = vld [vmem:[%s6 + $0x28] sm:$0xff]
    %v742 = vld [vmem:[%s6 + $0x30] sm:$0xff]
    %v743 = vld [vmem:[%s6 + $0x38] sm:$0xff]
    %745 = vset.pattern.permute.xlu0 0
    %746 = vperm.xlu0 %745, %v736
    %v747 = vpop.permute.xlu0 %746
    %750 = vset.pattern.permute.xlu0 0
    %751 = vperm.xlu0 %750, %v737
    %v752 = vpop.permute.xlu0 %751
    %755 = vset.pattern.permute.xlu0 0
    %756 = vperm.xlu0 %755, %v738
    %v757 = vpop.permute.xlu0 %756
    %760 = vset.pattern.permute.xlu0 0
    %761 = vperm.xlu0 %760, %v739
    %v762 = vpop.permute.xlu0 %761
    %765 = vset.pattern.permute.xlu0 0
    %766 = vperm.xlu0 %765, %v740
    %v767 = vpop.permute.xlu0 %766
    %770 = vset.pattern.permute.xlu0 0
    %771 = vperm.xlu0 %770, %v741
    %v772 = vpop.permute.xlu0 %771
    %775 = vset.pattern.permute.xlu0 0
    %776 = vperm.xlu0 %775, %v742
    %v777 = vpop.permute.xlu0 %776
    %780 = vset.pattern.permute.xlu0 0
    %781 = vperm.xlu0 %780, %v743
    %v782 = vpop.permute.xlu0 %781
    %vm784 = vcmask 261120
    %v786 = vsel %vm784, %v728, 0
    %v789 = vsel %vm784, %v729, 0
    %v792 = vsel %vm784, %v730, 0
    %v795 = vsel %vm784, %v731, 0
    %v798 = vsel %vm784, %v732, 0
    %v801 = vsel %vm784, %v733, 0
    %v804 = vsel %vm784, %v734, 0
    %v807 = vsel %vm784, %v735, 0
    %809 = vmatprep.subr.mxu0 0.0
    %810 = vmatpush1.msra.mxu0 %v724
    %811 = vmatprep.subr.mxu0 0.0
    %812 = vmatpush1.msra.mxu0 %v725
    %813 = vmatprep.subr.mxu0 0.0
    %814 = vmatpush1.msra.mxu0 %v726
    %815 = vmatprep.subr.mxu0 0.0
    %816 = vmatpush1.msra.mxu0 %v727
    %817 = vmatprep.subr.mxu0 0.0
    %818 = vmatpush1.msra.mxu0 0.0
    %819 = vmatprep.subr.mxu0 0.0
    %820 = vmatpush1.msra.mxu0 0.0
    %821 = vmatprep.subr.mxu0 0.0
    %822 = vmatpush1.msra.mxu0 0.0
    %823 = vmatprep.subr.mxu0 0.0
    %824 = vmatpush1.msra.mxu0 0.0
    %825 = vmatprep.subr.mxu0 0.0
    %826 = vmatpush1.msra.mxu0 0.0
    %827 = vmatprep.subr.mxu0 0.0
    %828 = vmatpush1.msra.mxu0 0.0
    %829 = vmatprep.subr.mxu0 0.0
    %830 = vmatpush1.msra.mxu0 0.0
    %831 = vmatprep.subr.mxu0 0.0
    %832 = vmatpush1.msra.mxu0 0.0
    %833 = vmatprep.subr.mxu0 0.0
    %834 = vmatpush1.msra.mxu0 0.0
    %835 = vmatprep.subr.mxu0 0.0
    %836 = vmatpush1.msra.mxu0 0.0
    %837 = vmatprep.subr.mxu0 0.0
    %838 = vmatpush1.msra.mxu0 0.0
    %839 = vmatprep.subr.mxu0 0.0
    %840 = vmatpush1.msra.mxu0 0.0
    %841 = vmatprep.subr.mxu0 0.0
    %842 = vmatpush1.msra.mxu0 0.0
    %843 = vmatprep.subr.mxu0 0.0
    %844 = vmatpush1.msra.mxu0 0.0
    %845 = vmatprep.subr.mxu0 0.0
    %846 = vmatpush1.msra.mxu0 0.0
    %847 = vmatprep.subr.mxu0 0.0
    %848 = vmatpush1.msra.mxu0 0.0
    %849 = vmatprep.subr.mxu0 0.0
    %850 = vmatpush1.msra.mxu0 0.0
    %851 = vmatprep.subr.mxu0 0.0
    %852 = vmatpush1.msra.mxu0 0.0
    %853 = vmatprep.subr.mxu0 0.0
    %854 = vmatpush1.msra.mxu0 0.0
    %855 = vmatprep.subr.mxu0 0.0
    %856 = vmatpush1.msra.mxu0 0.0
    %857 = vmatprep.subr.mxu0 0.0
    %858 = vmatpush1.msra.mxu0 0.0
    %859 = vmatprep.subr.mxu0 0.0
    %860 = vmatpush1.msra.mxu0 0.0
    %861 = vmatprep.subr.mxu0 0.0
    %862 = vmatpush1.msra.mxu0 0.0
    %863 = vmatprep.subr.mxu0 0.0
    %864 = vmatpush1.msra.mxu0 0.0
    %865 = vmatprep.subr.mxu0 0.0
    %866 = vmatpush1.msra.mxu0 0.0
    %867 = vmatprep.subr.mxu0 0.0
    %868 = vmatpush1.msra.mxu0 0.0
    %869 = vmatprep.subr.mxu0 0.0
    %870 = vmatpush1.msra.mxu0 0.0
    %871 = vmatprep.subr.mxu0 0.0
    %872 = vmatpush1.msra.mxu0 0.0
    %873 = vmatprep.mubr.f32.mxu0 0.0
    %874 = vmatmul.mubr.f32.gmra.mrb[0].mxu0 %v786
    %v875 = vpop.f32.mrb[0].mxu0
    %v876 = vadd.f32 %v747, %v875
    %v877 = vpop.f32.mrb[0].mxu0
    %878 = vmatprep.mubr.f32.mxu0 0.0
    %879 = vmatmul.mubr.f32.gmra.mrb[0].mxu0 %v789
    %v880 = vpop.f32.mrb[0].mxu0
    %v881 = vadd.f32 %v752, %v880
    %v882 = vpop.f32.mrb[0].mxu0
    %883 = vmatprep.mubr.f32.mxu0 0.0
    %884 = vmatmul.mubr.f32.gmra.mrb[0].mxu0 %v792
    %v885 = vpop.f32.mrb[0].mxu0
    %v886 = vadd.f32 %v757, %v885
    %v887 = vpop.f32.mrb[0].mxu0
    %888 = vmatprep.mubr.f32.mxu0 0.0
    %889 = vmatmul.mubr.f32.gmra.mrb[0].mxu0 %v795
    %v890 = vpop.f32.mrb[0].mxu0
    %v891 = vadd.f32 %v762, %v890
    %v892 = vpop.f32.mrb[0].mxu0
    %893 = vmatprep.mubr.f32.mxu0 0.0
    %894 = vmatmul.mubr.f32.gmra.mrb[0].mxu0 %v798
    %v895 = vpop.f32.mrb[0].mxu0
    %v896 = vadd.f32 %v767, %v895
    %v897 = vpop.f32.mrb[0].mxu0
    %898 = vmatprep.mubr.f32.mxu0 0.0
    %899 = vmatmul.mubr.f32.gmra.mrb[0].mxu0 %v801
    %v900 = vpop.f32.mrb[0].mxu0
    %v901 = vadd.f32 %v772, %v900
    %v902 = vpop.f32.mrb[0].mxu0
    %903 = vmatprep.mubr.f32.mxu0 0.0
    %904 = vmatmul.mubr.f32.gmra.mrb[0].mxu0 %v804
    %v905 = vpop.f32.mrb[0].mxu0
    %v906 = vadd.f32 %v777, %v905
    %v907 = vpop.f32.mrb[0].mxu0
    %908 = vmatprep.mubr.f32.mxu0 0.0
    %909 = vmatmul.mubr.f32.gmra.mrb[0].mxu0 %v807
    %v910 = vpop.f32.mrb[0].mxu0
    %v911 = vadd.f32 %v782, %v910
    %v912 = vpop.f32.mrb[0].mxu0
    %913 = vdwg.mxu0
    %v914 = vmax.f32 %v876, -1.0
    %v915 = vmax.f32 %v881, -1.0
    %v916 = vmax.f32 %v886, -1.0
    %v917 = vmax.f32 %v891, -1.0
    %v918 = vmin.f32 %v914, 1.0
    %v919 = vmin.f32 %v915, 1.0
    %v920 = vmin.f32 %v916, 1.0
    %v921 = vmin.f32 %v917, 1.0
    %s922 = sld [smem:[#allocation5 + $0x100]]
    %s923 = sld [smem:[#allocation2 + $0x100]]
    %v924 = vstv %s923
    %v925 = vsub.f32 %v918, %v924
    %v926 = vsub.f32 %v919, %v924
    %v927 = vsub.f32 %v920, %v924
    %v928 = vsub.f32 %v921, %v924
    %v929 = vand.u32 2147483647, %v925
    %v930 = vand.u32 2147483647, %v926
    %v931 = vand.u32 2147483647, %v927
    %v932 = vand.u32 2147483647, %v928
    %v933 = vstv %s922
    %v934 = vmul.f32 %v933, %v929
    %v935 = vmul.f32 %v933, %v930
    %v936 = vmul.f32 %v933, %v931
    %v937 = vmul.f32 %v933, %v932
    %v938 = vadd.f32 %v934, 0.0
    %v939 = vadd.f32 %v935, 0.0
    %v940 = vadd.f32 %v936, 0.0
    %v941 = vadd.f32 %v937, 0.0
    %s942 = sld [smem:[#allocation5 + $0x101]]
    %s943 = sld [smem:[#allocation2 + $0x101]]
    %v944 = vstv %s943
    %v945 = vsub.f32 %v918, %v944
    %v946 = vsub.f32 %v919, %v944
    %v947 = vsub.f32 %v920, %v944
    %v948 = vsub.f32 %v921, %v944
    %v949 = vand.u32 2147483647, %v945
    %v950 = vand.u32 2147483647, %v946
    %v951 = vand.u32 2147483647, %v947
    %v952 = vand.u32 2147483647, %v948
    %v953 = vstv %s942
    %v954 = vmul.f32 %v953, %v949
    %v955 = vmul.f32 %v953, %v950
    %v956 = vmul.f32 %v953, %v951
    %v957 = vmul.f32 %v953, %v952
    %v958 = vadd.f32 %v938, %v954
    %v959 = vadd.f32 %v939, %v955
    %v960 = vadd.f32 %v940, %v956
    %v961 = vadd.f32 %v941, %v957
    %s962 = sld [smem:[#allocation5 + $0x102]]
    %s963 = sld [smem:[#allocation2 + $0x102]]
    %v964 = vstv %s963
    %v965 = vsub.f32 %v918, %v964
    %v966 = vsub.f32 %v919, %v964
    %v967 = vsub.f32 %v920, %v964
    %v968 = vsub.f32 %v921, %v964
    %v969 = vand.u32 2147483647, %v965
    %v970 = vand.u32 2147483647, %v966
    %v971 = vand.u32 2147483647, %v967
    %v972 = vand.u32 2147483647, %v968
    %v973 = vstv %s962
    %v974 = vmul.f32 %v973, %v969
    %v975 = vmul.f32 %v973, %v970
    %v976 = vmul.f32 %v973, %v971
    %v977 = vmul.f32 %v973, %v972
    %v978 = vadd.f32 %v958, %v974
    %v979 = vadd.f32 %v959, %v975
    %v980 = vadd.f32 %v960, %v976
    %v981 = vadd.f32 %v961, %v977
    %s982 = sld [smem:[#allocation5 + $0x103]]
    %s983 = sld [smem:[#allocation2 + $0x103]]
    %v984 = vstv %s983
    %v985 = vsub.f32 %v918, %v984
    %v986 = vsub.f32 %v919, %v984
    %v987 = vsub.f32 %v920, %v984
    %v988 = vsub.f32 %v921, %v984
    %v989 = vand.u32 2147483647, %v985
    %v990 = vand.u32 2147483647, %v986
    %v991 = vand.u32 2147483647, %v987
    %v992 = vand.u32 2147483647, %v988
    %v993 = vstv %s982
    %v994 = vmul.f32 %v993, %v989
    %v995 = vmul.f32 %v993, %v990
    %v996 = vmul.f32 %v993, %v991
    %v997 = vmul.f32 %v993, %v992
    %v998 = vadd.f32 %v978, %v994
    %v999 = vadd.f32 %v979, %v995
    %v1000 = vadd.f32 %v980, %v996
    %v1001 = vadd.f32 %v981, %v997
    %s1002 = sld [smem:[#allocation5 + $0x104]]
    %s1003 = sld [smem:[#allocation2 + $0x104]]
    %v1004 = vstv %s1003
    %v1005 = vsub.f32 %v918, %v1004
    %v1006 = vsub.f32 %v919, %v1004
    %v1007 = vsub.f32 %v920, %v1004
    %v1008 = vsub.f32 %v921, %v1004
    %v1009 = vand.u32 2147483647, %v1005
    %v1010 = vand.u32 2147483647, %v1006
    %v1011 = vand.u32 2147483647, %v1007
    %v1012 = vand.u32 2147483647, %v1008
    %v1013 = vstv %s1002
    %v1014 = vmul.f32 %v1013, %v1009
    %v1015 = vmul.f32 %v1013, %v1010
    %v1016 = vmul.f32 %v1013, %v1011
    %v1017 = vmul.f32 %v1013, %v1012
    %v1018 = vadd.f32 %v998, %v1014
    %v1019 = vadd.f32 %v999, %v1015
    %v1020 = vadd.f32 %v1000, %v1016
    %v1021 = vadd.f32 %v1001, %v1017
    %s1022 = sld [smem:[#allocation5 + $0x105]]
    %s1023 = sld [smem:[#allocation2 + $0x105]]
    %v1024 = vstv %s1023
    %v1025 = vsub.f32 %v918, %v1024
    %v1026 = vsub.f32 %v919, %v1024
    %v1027 = vsub.f32 %v920, %v1024
    %v1028 = vsub.f32 %v921, %v1024
    %v1029 = vand.u32 2147483647, %v1025
    %v1030 = vand.u32 2147483647, %v1026
    %v1031 = vand.u32 2147483647, %v1027
    %v1032 = vand.u32 2147483647, %v1028
    %v1033 = vstv %s1022
    %v1034 = vmul.f32 %v1033, %v1029
    %v1035 = vmul.f32 %v1033, %v1030
    %v1036 = vmul.f32 %v1033, %v1031
    %v1037 = vmul.f32 %v1033, %v1032
    %v1038 = vadd.f32 %v1018, %v1034
    %v1039 = vadd.f32 %v1019, %v1035
    %v1040 = vadd.f32 %v1020, %v1036
    %v1041 = vadd.f32 %v1021, %v1037
    %s1042 = sld [smem:[#allocation5 + $0x106]]
    %s1043 = sld [smem:[#allocation2 + $0x106]]
    %v1044 = vstv %s1043
    %v1045 = vsub.f32 %v918, %v1044
    %v1046 = vsub.f32 %v919, %v1044
    %v1047 = vsub.f32 %v920, %v1044
    %v1048 = vsub.f32 %v921, %v1044
    %v1049 = vand.u32 2147483647, %v1045
    %v1050 = vand.u32 2147483647, %v1046
    %v1051 = vand.u32 2147483647, %v1047
    %v1052 = vand.u32 2147483647, %v1048
    %v1053 = vstv %s1042
    %v1054 = vmul.f32 %v1053, %v1049
    %v1055 = vmul.f32 %v1053, %v1050
    %v1056 = vmul.f32 %v1053, %v1051
    %v1057 = vmul.f32 %v1053, %v1052
    %v1058 = vadd.f32 %v1038, %v1054
    %v1059 = vadd.f32 %v1039, %v1055
    %v1060 = vadd.f32 %v1040, %v1056
    %v1061 = vadd.f32 %v1041, %v1057
    %s1062 = sld [smem:[#allocation5 + $0x107]]
    %s1063 = sld [smem:[#allocation2 + $0x107]]
    %v1064 = vstv %s1063
    %v1065 = vsub.f32 %v918, %v1064
    %v1066 = vsub.f32 %v919, %v1064
    %v1067 = vsub.f32 %v920, %v1064
    %v1068 = vsub.f32 %v921, %v1064
    %v1069 = vand.u32 2147483647, %v1065
    %v1070 = vand.u32 2147483647, %v1066
    %v1071 = vand.u32 2147483647, %v1067
    %v1072 = vand.u32 2147483647, %v1068
    %v1073 = vstv %s1062
    %v1074 = vmul.f32 %v1073, %v1069
    %v1075 = vmul.f32 %v1073, %v1070
    %v1076 = vmul.f32 %v1073, %v1071
    %v1077 = vmul.f32 %v1073, %v1072
    %v1078 = vadd.f32 %v1058, %v1074
    %v1079 = vadd.f32 %v1059, %v1075
    %v1080 = vadd.f32 %v1060, %v1076
    %v1081 = vadd.f32 %v1061, %v1077
    %s1082 = sld [smem:[#allocation5 + $0x108]]
    %s1083 = sld [smem:[#allocation2 + $0x108]]
    %v1084 = vstv %s1083
    %v1085 = vsub.f32 %v918, %v1084
    %v1086 = vsub.f32 %v919, %v1084
    %v1087 = vsub.f32 %v920, %v1084
    %v1088 = vsub.f32 %v921, %v1084
    %v1089 = vand.u32 2147483647, %v1085
    %v1090 = vand.u32 2147483647, %v1086
    %v1091 = vand.u32 2147483647, %v1087
    %v1092 = vand.u32 2147483647, %v1088
    %v1093 = vstv %s1082
    %v1094 = vmul.f32 %v1093, %v1089
    %v1095 = vmul.f32 %v1093, %v1090
    %v1096 = vmul.f32 %v1093, %v1091
    %v1097 = vmul.f32 %v1093, %v1092
    %v1098 = vadd.f32 %v1078, %v1094
    %v1099 = vadd.f32 %v1079, %v1095
    %v1100 = vadd.f32 %v1080, %v1096
    %v1101 = vadd.f32 %v1081, %v1097
    %s1102 = sld [smem:[#allocation5 + $0x109]]
    %s1103 = sld [smem:[#allocation2 + $0x109]]
    %v1104 = vstv %s1103
    %v1105 = vsub.f32 %v918, %v1104
    %v1106 = vsub.f32 %v919, %v1104
    %v1107 = vsub.f32 %v920, %v1104
    %v1108 = vsub.f32 %v921, %v1104
    %v1109 = vand.u32 2147483647, %v1105
    %v1110 = vand.u32 2147483647, %v1106
    %v1111 = vand.u32 2147483647, %v1107
    %v1112 = vand.u32 2147483647, %v1108
    %v1113 = vstv %s1102
    %v1114 = vmul.f32 %v1113, %v1109
    %v1115 = vmul.f32 %v1113, %v1110
    %v1116 = vmul.f32 %v1113, %v1111
    %v1117 = vmul.f32 %v1113, %v1112
    %v1118 = vadd.f32 %v1098, %v1114
    %v1119 = vadd.f32 %v1099, %v1115
    %v1120 = vadd.f32 %v1100, %v1116
    %v1121 = vadd.f32 %v1101, %v1117
    %v1122 = vmax.f32 %v896, -1.0
    %v1123 = vmax.f32 %v901, -1.0
    %v1124 = vmax.f32 %v906, -1.0
    %v1125 = vmax.f32 %v911, -1.0
    %v1126 = vmin.f32 %v1122, 1.0
    %v1127 = vmin.f32 %v1123, 1.0
    %v1128 = vmin.f32 %v1124, 1.0
    %v1129 = vmin.f32 %v1125, 1.0
    %s1130 = sld [smem:[#allocation5 + $0x180]]
    %s1131 = sld [smem:[#allocation2 + $0x180]]
    %v1132 = vstv %s1131
    %v1133 = vsub.f32 %v1126, %v1132
    %v1134 = vsub.f32 %v1127, %v1132
    %v1135 = vsub.f32 %v1128, %v1132
    %v1136 = vsub.f32 %v1129, %v1132
    %v1137 = vand.u32 2147483647, %v1133
    %v1138 = vand.u32 2147483647, %v1134
    %v1139 = vand.u32 2147483647, %v1135
    %v1140 = vand.u32 2147483647, %v1136
    %v1141 = vstv %s1130
    %v1142 = vmul.f32 %v1141, %v1137
    %v1143 = vmul.f32 %v1141, %v1138
    %v1144 = vmul.f32 %v1141, %v1139
    %v1145 = vmul.f32 %v1141, %v1140
    %v1146 = vadd.f32 %v1142, 0.0
    %v1147 = vadd.f32 %v1143, 0.0
    %v1148 = vadd.f32 %v1144, 0.0
    %v1149 = vadd.f32 %v1145, 0.0
    %s1150 = sld [smem:[#allocation5 + $0x181]]
    %s1151 = sld [smem:[#allocation2 + $0x181]]
    %v1152 = vstv %s1151
    %v1153 = vsub.f32 %v1126, %v1152
    %v1154 = vsub.f32 %v1127, %v1152
    %v1155 = vsub.f32 %v1128, %v1152
    %v1156 = vsub.f32 %v1129, %v1152
    %v1157 = vand.u32 2147483647, %v1153
    %v1158 = vand.u32 2147483647, %v1154
    %v1159 = vand.u32 2147483647, %v1155
    %v1160 = vand.u32 2147483647, %v1156
    %v1161 = vstv %s1150
    %v1162 = vmul.f32 %v1161, %v1157
    %v1163 = vmul.f32 %v1161, %v1158
    %v1164 = vmul.f32 %v1161, %v1159
    %v1165 = vmul.f32 %v1161, %v1160
    %v1166 = vadd.f32 %v1146, %v1162
    %v1167 = vadd.f32 %v1147, %v1163
    %v1168 = vadd.f32 %v1148, %v1164
    %v1169 = vadd.f32 %v1149, %v1165
    %s1170 = sld [smem:[#allocation5 + $0x182]]
    %s1171 = sld [smem:[#allocation2 + $0x182]]
    %v1172 = vstv %s1171
    %v1173 = vsub.f32 %v1126, %v1172
    %v1174 = vsub.f32 %v1127, %v1172
    %v1175 = vsub.f32 %v1128, %v1172
    %v1176 = vsub.f32 %v1129, %v1172
    %v1177 = vand.u32 2147483647, %v1173
    %v1178 = vand.u32 2147483647, %v1174
    %v1179 = vand.u32 2147483647, %v1175
    %v1180 = vand.u32 2147483647, %v1176
    %v1181 = vstv %s1170
    %v1182 = vmul.f32 %v1181, %v1177
    %v1183 = vmul.f32 %v1181, %v1178
    %v1184 = vmul.f32 %v1181, %v1179
    %v1185 = vmul.f32 %v1181, %v1180
    %v1186 = vadd.f32 %v1166, %v1182
    %v1187 = vadd.f32 %v1167, %v1183
    %v1188 = vadd.f32 %v1168, %v1184
    %v1189 = vadd.f32 %v1169, %v1185
    %s1190 = sld [smem:[#allocation5 + $0x183]]
    %s1191 = sld [smem:[#allocation2 + $0x183]]
    %v1192 = vstv %s1191
    %v1193 = vsub.f32 %v1126, %v1192
    %v1194 = vsub.f32 %v1127, %v1192
    %v1195 = vsub.f32 %v1128, %v1192
    %v1196 = vsub.f32 %v1129, %v1192
    %v1197 = vand.u32 2147483647, %v1193
    %v1198 = vand.u32 2147483647, %v1194
    %v1199 = vand.u32 2147483647, %v1195
    %v1200 = vand.u32 2147483647, %v1196
    %v1201 = vstv %s1190
    %v1202 = vmul.f32 %v1201, %v1197
    %v1203 = vmul.f32 %v1201, %v1198
    %v1204 = vmul.f32 %v1201, %v1199
    %v1205 = vmul.f32 %v1201, %v1200
    %v1206 = vadd.f32 %v1186, %v1202
    %v1207 = vadd.f32 %v1187, %v1203
    %v1208 = vadd.f32 %v1188, %v1204
    %v1209 = vadd.f32 %v1189, %v1205
    %s1210 = sld [smem:[#allocation5 + $0x184]]
    %s1211 = sld [smem:[#allocation2 + $0x184]]
    %v1212 = vstv %s1211
    %v1213 = vsub.f32 %v1126, %v1212
    %v1214 = vsub.f32 %v1127, %v1212
    %v1215 = vsub.f32 %v1128, %v1212
    %v1216 = vsub.f32 %v1129, %v1212
    %v1217 = vand.u32 2147483647, %v1213
    %v1218 = vand.u32 2147483647, %v1214
    %v1219 = vand.u32 2147483647, %v1215
    %v1220 = vand.u32 2147483647, %v1216
    %v1221 = vstv %s1210
    %v1222 = vmul.f32 %v1221, %v1217
    %v1223 = vmul.f32 %v1221, %v1218
    %v1224 = vmul.f32 %v1221, %v1219
    %v1225 = vmul.f32 %v1221, %v1220
    %v1226 = vadd.f32 %v1206, %v1222
    %v1227 = vadd.f32 %v1207, %v1223
    %v1228 = vadd.f32 %v1208, %v1224
    %v1229 = vadd.f32 %v1209, %v1225
    %s1230 = sld [smem:[#allocation5 + $0x185]]
    %s1231 = sld [smem:[#allocation2 + $0x185]]
    %v1232 = vstv %s1231
    %v1233 = vsub.f32 %v1126, %v1232
    %v1234 = vsub.f32 %v1127, %v1232
    %v1235 = vsub.f32 %v1128, %v1232
    %v1236 = vsub.f32 %v1129, %v1232
    %v1237 = vand.u32 2147483647, %v1233
    %v1238 = vand.u32 2147483647, %v1234
    %v1239 = vand.u32 2147483647, %v1235
    %v1240 = vand.u32 2147483647, %v1236
    %v1241 = vstv %s1230
    %v1242 = vmul.f32 %v1241, %v1237
    %v1243 = vmul.f32 %v1241, %v1238
    %v1244 = vmul.f32 %v1241, %v1239
    %v1245 = vmul.f32 %v1241, %v1240
    %v1246 = vadd.f32 %v1226, %v1242
    %v1247 = vadd.f32 %v1227, %v1243
    %v1248 = vadd.f32 %v1228, %v1244
    %v1249 = vadd.f32 %v1229, %v1245
    %s1250 = sld [smem:[#allocation5 + $0x186]]
    %s1251 = sld [smem:[#allocation2 + $0x186]]
    %v1252 = vstv %s1251
    %v1253 = vsub.f32 %v1126, %v1252
    %v1254 = vsub.f32 %v1127, %v1252
    %v1255 = vsub.f32 %v1128, %v1252
    %v1256 = vsub.f32 %v1129, %v1252
    %v1257 = vand.u32 2147483647, %v1253
    %v1258 = vand.u32 2147483647, %v1254
    %v1259 = vand.u32 2147483647, %v1255
    %v1260 = vand.u32 2147483647, %v1256
    %v1261 = vstv %s1250
    %v1262 = vmul.f32 %v1261, %v1257
    %v1263 = vmul.f32 %v1261, %v1258
    %v1264 = vmul.f32 %v1261, %v1259
    %v1265 = vmul.f32 %v1261, %v1260
    %v1266 = vadd.f32 %v1246, %v1262
    %v1267 = vadd.f32 %v1247, %v1263
    %v1268 = vadd.f32 %v1248, %v1264
    %v1269 = vadd.f32 %v1249, %v1265
    %s1270 = sld [smem:[#allocation5 + $0x187]]
    %s1271 = sld [smem:[#allocation2 + $0x187]]
    %v1272 = vstv %s1271
    %v1273 = vsub.f32 %v1126, %v1272
    %v1274 = vsub.f32 %v1127, %v1272
    %v1275 = vsub.f32 %v1128, %v1272
    %v1276 = vsub.f32 %v1129, %v1272
    %v1277 = vand.u32 2147483647, %v1273
    %v1278 = vand.u32 2147483647, %v1274
    %v1279 = vand.u32 2147483647, %v1275
    %v1280 = vand.u32 2147483647, %v1276
    %v1281 = vstv %s1270
    %v1282 = vmul.f32 %v1281, %v1277
    %v1283 = vmul.f32 %v1281, %v1278
    %v1284 = vmul.f32 %v1281, %v1279
    %v1285 = vmul.f32 %v1281, %v1280
    %v1286 = vadd.f32 %v1266, %v1282
    %v1287 = vadd.f32 %v1267, %v1283
    %v1288 = vadd.f32 %v1268, %v1284
    %v1289 = vadd.f32 %v1269, %v1285
    %s1290 = sld [smem:[#allocation5 + $0x188]]
    %s1291 = sld [smem:[#allocation2 + $0x188]]
    %v1292 = vstv %s1291
    %v1293 = vsub.f32 %v1126, %v1292
    %v1294 = vsub.f32 %v1127, %v1292
    %v1295 = vsub.f32 %v1128, %v1292
    %v1296 = vsub.f32 %v1129, %v1292
    %v1297 = vand.u32 2147483647, %v1293
    %v1298 = vand.u32 2147483647, %v1294
    %v1299 = vand.u32 2147483647, %v1295
    %v1300 = vand.u32 2147483647, %v1296
    %v1301 = vstv %s1290
    %v1302 = vmul.f32 %v1301, %v1297
    %v1303 = vmul.f32 %v1301, %v1298
    %v1304 = vmul.f32 %v1301, %v1299
    %v1305 = vmul.f32 %v1301, %v1300
    %v1306 = vadd.f32 %v1286, %v1302
    %v1307 = vadd.f32 %v1287, %v1303
    %v1308 = vadd.f32 %v1288, %v1304
    %v1309 = vadd.f32 %v1289, %v1305
    %s1310 = sld [smem:[#allocation5 + $0x189]]
    %s1311 = sld [smem:[#allocation2 + $0x189]]
    %v1312 = vstv %s1311
    %v1313 = vsub.f32 %v1126, %v1312
    %v1314 = vsub.f32 %v1127, %v1312
    %v1315 = vsub.f32 %v1128, %v1312
    %v1316 = vsub.f32 %v1129, %v1312
    %v1317 = vand.u32 2147483647, %v1313
    %v1318 = vand.u32 2147483647, %v1314
    %v1319 = vand.u32 2147483647, %v1315
    %v1320 = vand.u32 2147483647, %v1316
    %v1321 = vstv %s1310
    %v1322 = vmul.f32 %v1321, %v1317
    %v1323 = vmul.f32 %v1321, %v1318
    %v1324 = vmul.f32 %v1321, %v1319
    %v1325 = vmul.f32 %v1321, %v1320
    %v1326 = vadd.f32 %v1306, %v1322
    %v1327 = vadd.f32 %v1307, %v1323
    %v1328 = vadd.f32 %v1308, %v1324
    %v1329 = vadd.f32 %v1309, %v1325
    %v1330 = vadd.f32 %v1118, %v1326
    %v1331 = vadd.f32 %v1119, %v1327
    %v1332 = vadd.f32 %v1120, %v1328
    %v1333 = vadd.f32 %v1121, %v1329
    %v1334 = vld [vmem:[%s7] sm:$0x3]
    %v1335 = vld [vmem:[%s8] sm:$0x3]
    %1337 = vset.pattern.permute.xlu0 0
    %1338 = vperm.xlu0 %1337, %v1335
    %v1339 = vpop.permute.xlu0 %1338
    %v1342 = vsel %vm784, %v1334, 0
    %1344 = vmatprep.subr.mxu0 0.0
    %1345 = vmatpush1.msra.mxu0 %v1330
    %1346 = vmatprep.subr.mxu0 0.0
    %1347 = vmatpush1.msra.mxu0 %v1331
    %1348 = vmatprep.subr.mxu0 0.0
    %1349 = vmatpush1.msra.mxu0 %v1332
    %1350 = vmatprep.subr.mxu0 0.0
    %1351 = vmatpush1.msra.mxu0 %v1333
    %1352 = vmatprep.subr.mxu0 0.0
    %1353 = vmatpush1.msra.mxu0 0.0
    %1354 = vmatprep.subr.mxu0 0.0
    %1355 = vmatpush1.msra.mxu0 0.0
    %1356 = vmatprep.subr.mxu0 0.0
    %1357 = vmatpush1.msra.mxu0 0.0
    %1358 = vmatprep.subr.mxu0 0.0
    %1359 = vmatpush1.msra.mxu0 0.0
    %1360 = vmatprep.subr.mxu0 0.0
    %1361 = vmatpush1.msra.mxu0 0.0
    %1362 = vmatprep.subr.mxu0 0.0
    %1363 = vmatpush1.msra.mxu0 0.0
    %1364 = vmatprep.subr.mxu0 0.0
    %1365 = vmatpush1.msra.mxu0 0.0
    %1366 = vmatprep.subr.mxu0 0.0
    %1367 = vmatpush1.msra.mxu0 0.0
    %1368 = vmatprep.subr.mxu0 0.0
    %1369 = vmatpush1.msra.mxu0 0.0
    %1370 = vmatprep.subr.mxu0 0.0
    %1371 = vmatpush1.msra.mxu0 0.0
    %1372 = vmatprep.subr.mxu0 0.0
    %1373 = vmatpush1.msra.mxu0 0.0
    %1374 = vmatprep.subr.mxu0 0.0
    %1375 = vmatpush1.msra.mxu0 0.0
    %1376 = vmatprep.subr.mxu0 0.0
    %1377 = vmatpush1.msra.mxu0 0.0
    %1378 = vmatprep.subr.mxu0 0.0
    %1379 = vmatpush1.msra.mxu0 0.0
    %1380 = vmatprep.subr.mxu0 0.0
    %1381 = vmatpush1.msra.mxu0 0.0
    %1382 = vmatprep.subr.mxu0 0.0
    %1383 = vmatpush1.msra.mxu0 0.0
    %1384 = vmatprep.subr.mxu0 0.0
    %1385 = vmatpush1.msra.mxu0 0.0
    %1386 = vmatprep.subr.mxu0 0.0
    %1387 = vmatpush1.msra.mxu0 0.0
    %1388 = vmatprep.subr.mxu0 0.0
    %1389 = vmatpush1.msra.mxu0 0.0
    %1390 = vmatprep.subr.mxu0 0.0
    %1391 = vmatpush1.msra.mxu0 0.0
    %1392 = vmatprep.subr.mxu0 0.0
    %1393 = vmatpush1.msra.mxu0 0.0
    %1394 = vmatprep.subr.mxu0 0.0
    %1395 = vmatpush1.msra.mxu0 0.0
    %1396 = vmatprep.subr.mxu0 0.0
    %1397 = vmatpush1.msra.mxu0 0.0
    %1398 = vmatprep.subr.mxu0 0.0
    %1399 = vmatpush1.msra.mxu0 0.0
    %1400 = vmatprep.subr.mxu0 0.0
    %1401 = vmatpush1.msra.mxu0 0.0
    %1402 = vmatprep.subr.mxu0 0.0
    %1403 = vmatpush1.msra.mxu0 0.0
    %1404 = vmatprep.subr.mxu0 0.0
    %1405 = vmatpush1.msra.mxu0 0.0
    %1406 = vmatprep.subr.mxu0 0.0
    %1407 = vmatpush1.msra.mxu0 0.0
    %1408 = vmatprep.mubr.f32.mxu0 0.0
    %1409 = vmatmul.mubr.f32.gmra.mrb[0].mxu0 %v1342
    %v1410 = vpop.f32.mrb[0].mxu0
    %v1411 = vadd.f32 %v1339, %v1410
    %v1412 = vpop.f32.mrb[0].mxu0
    %1413 = vdwg.mxu0
    %v1414 = vmax.f32 %v1411, -1.0
    %v1415 = vmin.f32 %v1414, 1.0
    %s1416 = sld [smem:[#allocation5 + $0x200]]
    %s1417 = sld [smem:[#allocation2 + $0x200]]
    %v1418 = vstv %s1417
    %v1419 = vsub.f32 %v1415, %v1418
    %v1420 = vand.u32 2147483647, %v1419
    %v1421 = vstv %s1416
    %v1422 = vmul.f32 %v1421, %v1420
    %v1423 = vadd.f32 %v1422, 0.0
    %s1424 = sld [smem:[#allocation5 + $0x201]]
    %s1425 = sld [smem:[#allocation2 + $0x201]]
    %v1426 = vstv %s1425
    %v1427 = vsub.f32 %v1415, %v1426
    %v1428 = vand.u32 2147483647, %v1427
    %v1429 = vstv %s1424
    %v1430 = vmul.f32 %v1429, %v1428
    %v1431 = vadd.f32 %v1423, %v1430
    %s1432 = sld [smem:[#allocation5 + $0x202]]
    %s1433 = sld [smem:[#allocation2 + $0x202]]
    %v1434 = vstv %s1433
    %v1435 = vsub.f32 %v1415, %v1434
    %v1436 = vand.u32 2147483647, %v1435
    %v1437 = vstv %s1432
    %v1438 = vmul.f32 %v1437, %v1436
    %v1439 = vadd.f32 %v1431, %v1438
    %s1440 = sld [smem:[#allocation5 + $0x203]]
    %s1441 = sld [smem:[#allocation2 + $0x203]]
    %v1442 = vstv %s1441
    %v1443 = vsub.f32 %v1415, %v1442
    %v1444 = vand.u32 2147483647, %v1443
    %v1445 = vstv %s1440
    %v1446 = vmul.f32 %v1445, %v1444
    %v1447 = vadd.f32 %v1439, %v1446
    %s1448 = sld [smem:[#allocation5 + $0x204]]
    %s1449 = sld [smem:[#allocation2 + $0x204]]
    %v1450 = vstv %s1449
    %v1451 = vsub.f32 %v1415, %v1450
    %v1452 = vand.u32 2147483647, %v1451
    %v1453 = vstv %s1448
    %v1454 = vmul.f32 %v1453, %v1452
    %v1455 = vadd.f32 %v1447, %v1454
    %s1456 = sld [smem:[#allocation5 + $0x205]]
    %s1457 = sld [smem:[#allocation2 + $0x205]]
    %v1458 = vstv %s1457
    %v1459 = vsub.f32 %v1415, %v1458
    %v1460 = vand.u32 2147483647, %v1459
    %v1461 = vstv %s1456
    %v1462 = vmul.f32 %v1461, %v1460
    %v1463 = vadd.f32 %v1455, %v1462
    %s1464 = sld [smem:[#allocation5 + $0x206]]
    %s1465 = sld [smem:[#allocation2 + $0x206]]
    %v1466 = vstv %s1465
    %v1467 = vsub.f32 %v1415, %v1466
    %v1468 = vand.u32 2147483647, %v1467
    %v1469 = vstv %s1464
    %v1470 = vmul.f32 %v1469, %v1468
    %v1471 = vadd.f32 %v1463, %v1470
    %s1472 = sld [smem:[#allocation5 + $0x207]]
    %s1473 = sld [smem:[#allocation2 + $0x207]]
    %v1474 = vstv %s1473
    %v1475 = vsub.f32 %v1415, %v1474
    %v1476 = vand.u32 2147483647, %v1475
    %v1477 = vstv %s1472
    %v1478 = vmul.f32 %v1477, %v1476
    %v1479 = vadd.f32 %v1471, %v1478
    %s1480 = sld [smem:[#allocation5 + $0x208]]
    %s1481 = sld [smem:[#allocation2 + $0x208]]
    %v1482 = vstv %s1481
    %v1483 = vsub.f32 %v1415, %v1482
    %v1484 = vand.u32 2147483647, %v1483
    %v1485 = vstv %s1480
    %v1486 = vmul.f32 %v1485, %v1484
    %v1487 = vadd.f32 %v1479, %v1486
    %s1488 = sld [smem:[#allocation5 + $0x209]]
    %s1489 = sld [smem:[#allocation2 + $0x209]]
    %v1490 = vstv %s1489
    %v1491 = vsub.f32 %v1415, %v1490
    %v1492 = vand.u32 2147483647, %v1491
    %v1493 = vstv %s1488
    %v1494 = vmul.f32 %v1493, %v1492
    %v1495 = vadd.f32 %v1487, %v1494
    %s1496 = sld [smem:[#allocation5 + $0x280]]
    %s1497 = sld [smem:[#allocation2 + $0x280]]
    %v1498 = vstv %s1497
    %v1499 = vsub.f32 %v1415, %v1498
    %v1500 = vand.u32 2147483647, %v1499
    %v1501 = vstv %s1496
    %v1502 = vmul.f32 %v1501, %v1500
    %v1503 = vadd.f32 %v1502, 0.0
    %s1504 = sld [smem:[#allocation5 + $0x281]]
    %s1505 = sld [smem:[#allocation2 + $0x281]]
    %v1506 = vstv %s1505
    %v1507 = vsub.f32 %v1415, %v1506
    %v1508 = vand.u32 2147483647, %v1507
    %v1509 = vstv %s1504
    %v1510 = vmul.f32 %v1509, %v1508
    %v1511 = vadd.f32 %v1503, %v1510
    %s1512 = sld [smem:[#allocation5 + $0x282]]
    %s1513 = sld [smem:[#allocation2 + $0x282]]
    %v1514 = vstv %s1513
    %v1515 = vsub.f32 %v1415, %v1514
    %v1516 = vand.u32 2147483647, %v1515
    %v1517 = vstv %s1512
    %v1518 = vmul.f32 %v1517, %v1516
    %v1519 = vadd.f32 %v1511, %v1518
    %s1520 = sld [smem:[#allocation5 + $0x283]]
    %s1521 = sld [smem:[#allocation2 + $0x283]]
    %v1522 = vstv %s1521
    %v1523 = vsub.f32 %v1415, %v1522
    %v1524 = vand.u32 2147483647, %v1523
    %v1525 = vstv %s1520
    %v1526 = vmul.f32 %v1525, %v1524
    %v1527 = vadd.f32 %v1519, %v1526
    %s1528 = sld [smem:[#allocation5 + $0x284]]
    %s1529 = sld [smem:[#allocation2 + $0x284]]
    %v1530 = vstv %s1529
    %v1531 = vsub.f32 %v1415, %v1530
    %v1532 = vand.u32 2147483647, %v1531
    %v1533 = vstv %s1528
    %v1534 = vmul.f32 %v1533, %v1532
    %v1535 = vadd.f32 %v1527, %v1534
    %s1536 = sld [smem:[#allocation5 + $0x285]]
    %s1537 = sld [smem:[#allocation2 + $0x285]]
    %v1538 = vstv %s1537
    %v1539 = vsub.f32 %v1415, %v1538
    %v1540 = vand.u32 2147483647, %v1539
    %v1541 = vstv %s1536
    %v1542 = vmul.f32 %v1541, %v1540
    %v1543 = vadd.f32 %v1535, %v1542
    %s1544 = sld [smem:[#allocation5 + $0x286]]
    %s1545 = sld [smem:[#allocation2 + $0x286]]
    %v1546 = vstv %s1545
    %v1547 = vsub.f32 %v1415, %v1546
    %v1548 = vand.u32 2147483647, %v1547
    %v1549 = vstv %s1544
    %v1550 = vmul.f32 %v1549, %v1548
    %v1551 = vadd.f32 %v1543, %v1550
    %s1552 = sld [smem:[#allocation5 + $0x287]]
    %s1553 = sld [smem:[#allocation2 + $0x287]]
    %v1554 = vstv %s1553
    %v1555 = vsub.f32 %v1415, %v1554
    %v1556 = vand.u32 2147483647, %v1555
    %v1557 = vstv %s1552
    %v1558 = vmul.f32 %v1557, %v1556
    %v1559 = vadd.f32 %v1551, %v1558
    %s1560 = sld [smem:[#allocation5 + $0x288]]
    %s1561 = sld [smem:[#allocation2 + $0x288]]
    %v1562 = vstv %s1561
    %v1563 = vsub.f32 %v1415, %v1562
    %v1564 = vand.u32 2147483647, %v1563
    %v1565 = vstv %s1560
    %v1566 = vmul.f32 %v1565, %v1564
    %v1567 = vadd.f32 %v1559, %v1566
    %s1568 = sld [smem:[#allocation5 + $0x289]]
    %s1569 = sld [smem:[#allocation2 + $0x289]]
    %v1570 = vstv %s1569
    %v1571 = vsub.f32 %v1415, %v1570
    %v1572 = vand.u32 2147483647, %v1571
    %v1573 = vstv %s1568
    %v1574 = vmul.f32 %v1573, %v1572
    %v1575 = vadd.f32 %v1567, %v1574
    %v1577 = vrot.slane %v1575, 1
    %v1579 = vadd.f32 %v1495, %v1577
    %v1580 = vxor.u32 %v1579, 2147483648
    %v1581 = vmul.f32 %v1580, 1.442695
    %v1582 = vpow.pop %v1581
    %v1583 = vadd.f32 %v1582, 1.0
    %v1584 = vrcp.pop %v1583
    %v1585 = vmul.f32 1.0, %v1584
    %1586 = vst [vmem:[#allocation7] sm:$0x1] %v1585
    // Predicated region
    $region46: #{tpu_custom_call.1} parent=1 // pred_check
      _
    $region47: #{tpu_custom_call.1} parent=1 // pred_check_branch
      %1588 = sbr.rel (0) target = $region49
    $region48: #{tpu_custom_call.1} parent=1 // pred_region
      %s1590 = ssub.s32 16, 16
      %1591 = vsyncadd [#allocation3], %s1590
      %s1593 = sshll.u32 [#allocation7], 4
      %s1594 = int_to_ptr.vmem [resolvable:$true] %s1593
      %1596 = dma.vmem_to_hbm [thread:$0]  %s1594, 16, %s9, [#allocation3]
    $region49: #{tpu_custom_call.1} parent=1 // pred_fallthru
      _
    // Predicated region
    $region50: #{tpu_custom_call.1} parent=1 // pred_check
      _
    $region51: #{tpu_custom_call.1} parent=1 // pred_check_branch
      %1598 = sbr.rel (0) target = $region53
    $region52: #{tpu_custom_call.1} parent=1 // pred_region
      %1599 = dma.done [#allocation3], 16
    $region53: #{tpu_custom_call.1} parent=1 // pred_fallthru
      _
    %1600 = vsyncpa [#allocation3], 1
    %1601 = vsyncpa [#allocation4], 1
    %1602 = vsyncpa [#allocation6], 1

</llo_original>
